<compile_context>
chip_gen: v7x
topology: tpu7x:2x2x1
jax: 0.10.0
libtpu: 0.0.40
codegen_flags: <defaults>
</compile_context>

<pallas_src>
import functools

import jax
import jax.numpy as jnp
from jax.experimental import pallas as pl
from jax.experimental.pallas import tpu as pltpu

KSIZE = 7
PAD = 3

_IN_BLOCK_BUDGET_BYTES = 2 * 1024 * 1024  # target VMEM footprint of one x block
_MAX_BLOCK_C = 64                         # bounds the unrolled reduce / live set


def _largest_divisor_leq(n, cap):
    cap = max(1, min(n, cap))
    for d in range(cap, 0, -1):
        if n % d == 0:
            return d
    return 1


def _vmem_tile_bytes(shape, itemsize):
    """Approximate VMEM footprint: last two dims padded to (8, 128) tiles."""
    if len(shape) < 2:
        return max(1, int(jnp.prod(jnp.array(shape)))) * itemsize if shape else itemsize
    lead = 1
    for d in shape[:-2]:
        lead *= d
    sub = ((shape[-2] + 7) // 8) * 8
    lane = ((shape[-1] + 127) // 128) * 128
    return lead * sub * lane * itemsize


def _build_band_matrices(weight, W):
    """Banded (W, W) matrices folding the kj taps + column zero-padding.

    bands[c, ki, w, x] = weight[0, c, ki, w - x + PAD]  if 0 <= w - x + PAD < 7
                         0                              otherwise
    so that  out[:, x] = sum_w slab[:, w] * bands[c, ki, w, x].
    """
    w0 = weight[0].astype(jnp.float32)                    # (2, 7, 7)
    src = jnp.arange(W)[:, None]                          # input column  w
    dst = jnp.arange(W)[None, :]                          # output column x
    kj = src - dst + PAD                                  # (W, W)
    valid = (kj >= 0) & (kj < KSIZE)
    kj_c = jnp.clip(kj, 0, KSIZE - 1)
    bands = jnp.where(valid[None, None], w0[:, :, kj_c], jnp.float32(0.0))
    return bands                                          # (2, 7, W, W) f32


def _spatial_attention_kernel(x_ref, band_ref, o_ref,
                              sum_ref, max_ref, pad_ref, *, n_chan, H, W):
    """One grid step: (batch block TB) x (channel block TC).

    x_ref   : (TB, TC, H, W)        VMEM  input block (native dtype)
    band_ref: (2, 7, W, W)          VMEM  banded conv matrices (f32, resident)
    o_ref   : (TB, 1, H, W)         VMEM  output block (written at last C step)
    sum_ref : (TB, H, W)      f32   VMEM  running channel sum  (lane-aligned)
    max_ref : (TB, H, W)      f32   VMEM  running channel max  (lane-aligned)
    pad_ref : (TB, 2, H+6, W) f32   VMEM  row-padded avg/max maps (halo in H only)
    """
    TB = sum_ref.shape[0]
    ci = pl.program_id(1)
    nc = pl.num_programs(1)

    # ---- fused, fully vectorised partial reduction over this channel block ----
    # Single pass over the streamed window; channel axis is not a lane/sublane
    # axis, so sum/max are plain VPU ops across vregs (no dynamic slicing).
    xb = x_ref[...].astype(jnp.float32)            # (TB, TC, H, W)
    bsum = jnp.sum(xb, axis=1)                     # (TB, H, W)
    bmax = jnp.max(xb, axis=1)                     # (TB, H, W)

    @pl.when(ci == 0)
    def _init():
        # First channel block: write partials directly (no init + RMW) and
        # zero only the 3-row halo strips of the padded maps (once per batch).
        sum_ref[...] = bsum
        max_ref[...] = bmax
        halo = jnp.zeros((TB, 2, PAD, W), jnp.float32)
        pad_ref[:, :, 0:PAD, :] = halo
        pad_ref[:, :, PAD + H:PAD + H + PAD, :] = halo

    @pl.when(ci != 0)
    def _accumulate():
        sum_ref[...] = sum_ref[...] + bsum
        max_ref[...] = jnp.maximum(max_ref[...], bmax)

    # ---- finalize (last C step): build padded maps, banded-matmul conv, sigmoid ----
    @pl.when(ci == nc - 1)
    def _finalize():
        inv_c = jnp.float32(1.0 / n_chan)
        pad_ref[:, 0, PAD:PAD + H, :] = sum_ref[...] * inv_c   # avg map interior
        pad_ref[:, 1, PAD:PAD + H, :] = max_ref[...]           # max map interior

        acc0 = jnp.zeros((TB * H, W), jnp.float32)
        acc1 = jnp.zeros((TB * H, W), jnp.float32)
        for ki in range(KSIZE):
            slab0 = pad_ref[:, 0, ki:ki + H, :].reshape(TB * H, W)
            slab1 = pad_ref[:, 1, ki:ki + H, :].reshape(TB * H, W)
            acc0 = acc0 + jnp.dot(slab0, band_ref[0, ki],
                                  preferred_element_type=jnp.float32)
            acc1 = acc1 + jnp.dot(slab1, band_ref[1, ki],
                                  preferred_element_type=jnp.float32)

        out = jax.nn.sigmoid(acc0 + acc1)
        o_ref[...] = out.reshape(TB, 1, H, W).astype(o_ref.dtype)


def spatial_attention(x, weight, *, block_b=None, block_c=None):
    """x: (B, C, H, W), weight: (1, 2, 7, 7) -> (B, 1, H, W)."""
    B, C, H, W = x.shape
    assert weight.shape == (1, 2, KSIZE, KSIZE)

    bands = _build_band_matrices(weight, W)            # (2, 7, W, W) f32
    itemsize = x.dtype.itemsize

    # Batch tiling: amortize per-step overhead but keep >= 2 parallel grid
    # steps when B >= 2 so both v7x TensorCores get work.
    if block_b is None:
        cap = min(8, max(1, B // 2)) if B >= 2 else 1
        block_b = _largest_divisor_leq(B, cap)
    # Channel tiling: keep the x block under a fixed VMEM budget computed with
    # (8,128) tile padding (narrow W is lane-padded in VMEM), and cap the
    # channel block so the unrolled in-register reduce stays modest.
    if block_c is None:
        per_c = _vmem_tile_bytes((block_b, 1, H, W), 4)    # f32-equivalent per channel
        cap = max(1, _IN_BLOCK_BUDGET_BYTES // per_c)
        block_c = _largest_divisor_leq(C, min(cap, _MAX_BLOCK_C))
    assert B % block_b == 0 and C % block_c == 0

    # Explicit VMEM budget (double-buffered inputs/outputs + scratch + upcast slack).
    in_bytes = _vmem_tile_bytes((block_b, block_c, H, W), itemsize)
    out_bytes = _vmem_tile_bytes((block_b, 1, H, W), itemsize)
    band_bytes = _vmem_tile_bytes((2, KSIZE, W, W), 4)
    scratch_bytes = (2 * _vmem_tile_bytes((block_b, H, W), 4)
                     + _vmem_tile_bytes((block_b, 2, H + 2 * PAD, W), 4))
    upcast_bytes = _vmem_tile_bytes((block_b, block_c, H, W), 4)
    needed = 2 * (in_bytes + out_bytes + band_bytes) + scratch_bytes + upcast_bytes
    vmem_limit = int(min(64 * 1024 * 1024, max(32 * 1024 * 1024, 2 * needed)))

    kernel = functools.partial(_spatial_attention_kernel, n_chan=C, H=H, W=W)

    return pl.pallas_call(
        kernel,
        out_shape=jax.ShapeDtypeStruct((B, 1, H, W), x.dtype),
        grid_spec=pltpu.PrefetchScalarGridSpec(
            num_scalar_prefetch=0,
            grid=(B // block_b, C // block_c),
            in_specs=[
                pl.BlockSpec((block_b, block_c, H, W), lambda b, c: (b, c, 0, 0)),
                pl.BlockSpec((2, KSIZE, W, W), lambda b, c: (0, 0, 0, 0)),
            ],
            out_specs=pl.BlockSpec((block_b, 1, H, W), lambda b, c: (b, 0, 0, 0)),
            scratch_shapes=[
                pltpu.VMEM((block_b, H, W), jnp.float32),               # channel sum
                pltpu.VMEM((block_b, H, W), jnp.float32),               # channel max
                pltpu.VMEM((block_b, 2, H + 2 * PAD, W), jnp.float32),  # row-padded maps
            ],
        ),
        compiler_params=pltpu.CompilerParams(
            dimension_semantics=("parallel", "arbitrary"),
            vmem_limit_bytes=vmem_limit,
        ),
    )(x, bands)


def spatial_attention_ref(x, weight):
    """Pure-JAX reference matching the PyTorch module semantics."""
    avg_out = jnp.mean(x, axis=1, keepdims=True)
    max_out = jnp.max(x, axis=1, keepdims=True)
    feat = jnp.concatenate([avg_out, max_out], axis=1)
    out = jax.lax.conv_general_dilated(
        feat.astype(jnp.float32),
        weight.astype(jnp.float32),
        window_strides=(1, 1),
        padding=[(PAD, PAD), (PAD, PAD)],
        dimension_numbers=("NCHW", "OIHW", "NCHW"),
    )
    return jax.nn.sigmoid(out).astype(x.dtype)


if __name__ == "__main__":
    key = jax.random.PRNGKey(0)
    kx, kw = jax.random.split(key)

    B, C, H, W = 2, 4, 16, 16
    x = jax.random.normal(kx, (B, C, H, W), dtype=jnp.float32)
    # Deterministic synthetic conv1 weight: Conv2d(2, 1, 7, padding=3, bias=False)
    weight = jax.random.normal(kw, (1, 2, KSIZE, KSIZE), dtype=jnp.float32) * 0.1

    out = jax.block_until_ready(spatial_attention(x, weight))
    ref = spatial_attention_ref(x, weight)

    assert out.shape == (B, 1, H, W), out.shape
    # Tolerance allows for MXU f32 matmul precision in the banded-conv path.
    assert jnp.allclose(out, ref, atol=2e-3, rtol=2e-3), (
        "mismatch vs reference, max abs diff = %e"
        % float(jnp.max(jnp.abs(out - ref))))

    print("KERNEL_OK")
</pallas_src>

<mosaic_0001>
module attributes {stable_mosaic.version = 11 : i64} {
  func.func @_spatial_attention_kernel(%arg0: i32, %arg1: i32, %arg2: memref<1x4x16x16xf32, #tpu.memory_space<vmem>>, %arg3: memref<2x7x16x16xf32, #tpu.memory_space<vmem>>, %arg4: memref<1x1x16x16xf32, #tpu.memory_space<vmem>>, %arg5: memref<1x16x16xf32, #tpu.memory_space<vmem>>, %arg6: memref<1x16x16xf32, #tpu.memory_space<vmem>>, %arg7: memref<1x2x22x16xf32, #tpu.memory_space<vmem>>) attributes {dimension_semantics = [#tpu.dimension_semantics<parallel>, #tpu.dimension_semantics<arbitrary>], iteration_bounds = array<i64: 2, 1>, scalar_prefetch = 0 : i64, scratch_operands = 3 : i64, tpu.core_type = #tpu.core_type<tc>, window_params = [{transform_indices = @transform_0, window_bounds = array<i64: 1, 4, 16, 16>}, {pipeline_mode = #tpu.pipeline_mode<synchronous>, transform_indices = @transform_1, window_bounds = array<i64: 2, 7, 16, 16>}, {transform_indices = @transform_2, window_bounds = array<i64: 1, 1, 16, 16>}]} {
    %c0 = arith.constant 0 : index
    %c0_0 = arith.constant 0 : index
    %c0_1 = arith.constant 0 : index
    %c0_2 = arith.constant 0 : index
    %0 = vector.load %arg2[%c0, %c0_0, %c0_1, %c0_2] : memref<1x4x16x16xf32, #tpu.memory_space<vmem>>, vector<1x4x16x16xf32>
    %cst = arith.constant dense<0.000000e+00> : vector<1x16x16xf32>
    %1 = vector.multi_reduction <add>, %0, %cst [1] : vector<1x4x16x16xf32> to vector<1x16x16xf32>
    %cst_3 = arith.constant dense<0xFF800000> : vector<1x16x16xf32>
    %2 = vector.multi_reduction <maximumf>, %0, %cst_3 [1] : vector<1x4x16x16xf32> to vector<1x16x16xf32>
    %c0_i32 = arith.constant 0 : i32
    %3 = arith.cmpi eq, %arg1, %c0_i32 : i32
    %4 = arith.extui %3 : i1 to i32
    %c0_i32_4 = arith.constant 0 : i32
    %5 = arith.cmpi ne, %4, %c0_i32_4 : i32
    scf.if %5 {
      %c0_9 = arith.constant 0 : index
      %c0_10 = arith.constant 0 : index
      %c0_11 = arith.constant 0 : index
      %12 = vector.load %arg5[%c0_9, %c0_10, %c0_11] : memref<1x16x16xf32, #tpu.memory_space<vmem>>, vector<1x16x16xf32>
      tpu.vector_store %arg5[%c0_9, %c0_10, %c0_11], %1 {strides = array<i32>} : memref<1x16x16xf32, #tpu.memory_space<vmem>>, vector<1x16x16xf32>,
      %c0_12 = arith.constant 0 : index
      %c0_13 = arith.constant 0 : index
      %c0_14 = arith.constant 0 : index
      %13 = vector.load %arg6[%c0_12, %c0_13, %c0_14] : memref<1x16x16xf32, #tpu.memory_space<vmem>>, vector<1x16x16xf32>
      tpu.vector_store %arg6[%c0_12, %c0_13, %c0_14], %2 {strides = array<i32>} : memref<1x16x16xf32, #tpu.memory_space<vmem>>, vector<1x16x16xf32>,
      %cst_15 = arith.constant 0.000000e+00 : f32
      %14 = vector.broadcast %cst_15 : f32 to vector<1x2x3x16xf32>
      %c0_16 = arith.constant 0 : index
      %c0_17 = arith.constant 0 : index
      %c0_18 = arith.constant 0 : index
      %c0_19 = arith.constant 0 : index
      %15 = vector.load %arg7[%c0_16, %c0_17, %c0_18, %c0_19] : memref<1x2x22x16xf32, #tpu.memory_space<vmem>>, vector<1x2x3x16xf32>
      tpu.vector_store %arg7[%c0_16, %c0_17, %c0_18, %c0_19], %14 {strides = array<i32>} : memref<1x2x22x16xf32, #tpu.memory_space<vmem>>, vector<1x2x3x16xf32>,
      %c0_20 = arith.constant 0 : index
      %c0_21 = arith.constant 0 : index
      %c19 = arith.constant 19 : index
      %c0_22 = arith.constant 0 : index
      %16 = vector.load %arg7[%c0_20, %c0_21, %c19, %c0_22] : memref<1x2x22x16xf32, #tpu.memory_space<vmem>>, vector<1x2x3x16xf32>
      tpu.vector_store %arg7[%c0_20, %c0_21, %c19, %c0_22], %14 {strides = array<i32>} : memref<1x2x22x16xf32, #tpu.memory_space<vmem>>, vector<1x2x3x16xf32>,
    } else {
    }
    %c0_i32_5 = arith.constant 0 : i32
    %6 = arith.cmpi ne, %arg1, %c0_i32_5 : i32
    %7 = arith.extui %6 : i1 to i32
    %c0_i32_6 = arith.constant 0 : i32
    %8 = arith.cmpi ne, %7, %c0_i32_6 : i32
    scf.if %8 {
      %c0_9 = arith.constant 0 : index
      %c0_10 = arith.constant 0 : index
      %c0_11 = arith.constant 0 : index
      %12 = vector.load %arg5[%c0_9, %c0_10, %c0_11] : memref<1x16x16xf32, #tpu.memory_space<vmem>>, vector<1x16x16xf32>
      %13 = arith.addf %12, %1 : vector<1x16x16xf32>
      %c0_12 = arith.constant 0 : index
      %c0_13 = arith.constant 0 : index
      %c0_14 = arith.constant 0 : index
      %14 = vector.load %arg5[%c0_12, %c0_13, %c0_14] : memref<1x16x16xf32, #tpu.memory_space<vmem>>, vector<1x16x16xf32>
      tpu.vector_store %arg5[%c0_12, %c0_13, %c0_14], %13 {strides = array<i32>} : memref<1x16x16xf32, #tpu.memory_space<vmem>>, vector<1x16x16xf32>,
      %c0_15 = arith.constant 0 : index
      %c0_16 = arith.constant 0 : index
      %c0_17 = arith.constant 0 : index
      %15 = vector.load %arg6[%c0_15, %c0_16, %c0_17] : memref<1x16x16xf32, #tpu.memory_space<vmem>>, vector<1x16x16xf32>
      %16 = arith.maximumf %15, %2 : vector<1x16x16xf32>
      %c0_18 = arith.constant 0 : index
      %c0_19 = arith.constant 0 : index
      %c0_20 = arith.constant 0 : index
      %17 = vector.load %arg6[%c0_18, %c0_19, %c0_20] : memref<1x16x16xf32, #tpu.memory_space<vmem>>, vector<1x16x16xf32>
      tpu.vector_store %arg6[%c0_18, %c0_19, %c0_20], %16 {strides = array<i32>} : memref<1x16x16xf32, #tpu.memory_space<vmem>>, vector<1x16x16xf32>,
    } else {
    }
    %c0_i32_7 = arith.constant 0 : i32
    %9 = arith.cmpi eq, %arg1, %c0_i32_7 : i32
    %10 = arith.extui %9 : i1 to i32
    %c0_i32_8 = arith.constant 0 : i32
    %11 = arith.cmpi ne, %10, %c0_i32_8 : i32
    scf.if %11 {
      %c0_9 = arith.constant 0 : index
      %c0_10 = arith.constant 0 : index
      %c0_11 = arith.constant 0 : index
      %12 = vector.load %arg5[%c0_9, %c0_10, %c0_11] : memref<1x16x16xf32, #tpu.memory_space<vmem>>, vector<1x16x16xf32>
      %cst_12 = arith.constant 2.500000e-01 : f32
      %13 = vector.broadcast %cst_12 : f32 to vector<1x16x16xf32>
      %14 = arith.mulf %12, %13 : vector<1x16x16xf32>
      %c0_13 = arith.constant 0 : index
      %c0_14 = arith.constant 0 : index
      %c3 = arith.constant 3 : index
      %c0_15 = arith.constant 0 : index
      %15 = vector.load %arg7[%c0_13, %c0_14, %c3, %c0_15] : memref<1x2x22x16xf32, #tpu.memory_space<vmem>>, vector<1x1x16x16xf32>
      %16 = vector.shape_cast %15 : vector<1x1x16x16xf32> to vector<1x16x16xf32>
      %17 = vector.shape_cast %14 : vector<1x16x16xf32> to vector<1x1x16x16xf32>
      tpu.vector_store %arg7[%c0_13, %c0_14, %c3, %c0_15], %17 {strides = array<i32>} : memref<1x2x22x16xf32, #tpu.memory_space<vmem>>, vector<1x1x16x16xf32>,
      %c0_16 = arith.constant 0 : index
      %c0_17 = arith.constant 0 : index
      %c0_18 = arith.constant 0 : index
      %18 = vector.load %arg6[%c0_16, %c0_17, %c0_18] : memref<1x16x16xf32, #tpu.memory_space<vmem>>, vector<1x16x16xf32>
      %c0_19 = arith.constant 0 : index
      %c1 = arith.constant 1 : index
      %c3_20 = arith.constant 3 : index
      %c0_21 = arith.constant 0 : index
      %19 = vector.load %arg7[%c0_19, %c1, %c3_20, %c0_21] : memref<1x2x22x16xf32, #tpu.memory_space<vmem>>, vector<1x1x16x16xf32>
      %20 = vector.shape_cast %19 : vector<1x1x16x16xf32> to vector<1x16x16xf32>
      %21 = vector.shape_cast %18 : vector<1x16x16xf32> to vector<1x1x16x16xf32>
      tpu.vector_store %arg7[%c0_19, %c1, %c3_20, %c0_21], %21 {strides = array<i32>} : memref<1x2x22x16xf32, #tpu.memory_space<vmem>>, vector<1x1x16x16xf32>,
      %cst_22 = arith.constant 0.000000e+00 : f32
      %22 = vector.broadcast %cst_22 : f32 to vector<16x16xf32>
      %cst_23 = arith.constant 0.000000e+00 : f32
      %23 = vector.broadcast %cst_23 : f32 to vector<16x16xf32>
      %c0_24 = arith.constant 0 : index
      %c0_25 = arith.constant 0 : index
      %c0_26 = arith.constant 0 : index
      %c0_27 = arith.constant 0 : index
      %24 = vector.load %arg7[%c0_24, %c0_25, %c0_26, %c0_27] : memref<1x2x22x16xf32, #tpu.memory_space<vmem>>, vector<1x1x16x16xf32>
      %25 = vector.shape_cast %24 : vector<1x1x16x16xf32> to vector<1x16x16xf32>
      %26 = vector.shape_cast %25 : vector<1x16x16xf32> to vector<16x16xf32>
      %c0_28 = arith.constant 0 : index
      %c1_29 = arith.constant 1 : index
      %c0_30 = arith.constant 0 : index
      %c0_31 = arith.constant 0 : index
      %27 = vector.load %arg7[%c0_28, %c1_29, %c0_30, %c0_31] : memref<1x2x22x16xf32, #tpu.memory_space<vmem>>, vector<1x1x16x16xf32>
      %28 = vector.shape_cast %27 : vector<1x1x16x16xf32> to vector<1x16x16xf32>
      %29 = vector.shape_cast %28 : vector<1x16x16xf32> to vector<16x16xf32>
      %c0_32 = arith.constant 0 : index
      %c0_33 = arith.constant 0 : index
      %c0_34 = arith.constant 0 : index
      %c0_35 = arith.constant 0 : index
      %30 = vector.load %arg3[%c0_32, %c0_33, %c0_34, %c0_35] : memref<2x7x16x16xf32, #tpu.memory_space<vmem>>, vector<1x1x16x16xf32>
      %31 = vector.shape_cast %30 : vector<1x1x16x16xf32> to vector<16x16xf32>
      %cst_36 = arith.constant dense<0.000000e+00> : vector<16x16xf32>
      %32 = tpu.matmul %26, %31, %cst_36 {dimension_numbers = #tpu.dot_dimension_numbers<[1], [0], [0], [1], [0, 0, 1, 1], [], []>} : vector<16x16xf32>, vector<16x16xf32>, vector<16x16xf32> -> vector<16x16xf32>
      %33 = arith.addf %22, %32 : vector<16x16xf32>
      %c1_37 = arith.constant 1 : index
      %c0_38 = arith.constant 0 : index
      %c0_39 = arith.constant 0 : index
      %c0_40 = arith.constant 0 : index
      %34 = vector.load %arg3[%c1_37, %c0_38, %c0_39, %c0_40] : memref<2x7x16x16xf32, #tpu.memory_space<vmem>>, vector<1x1x16x16xf32>
      %35 = vector.shape_cast %34 : vector<1x1x16x16xf32> to vector<16x16xf32>
      %cst_41 = arith.constant dense<0.000000e+00> : vector<16x16xf32>
      %36 = tpu.matmul %29, %35, %cst_41 {dimension_numbers = #tpu.dot_dimension_numbers<[1], [0], [0], [1], [0, 0, 1, 1], [], []>} : vector<16x16xf32>, vector<16x16xf32>, vector<16x16xf32> -> vector<16x16xf32>
      %37 = arith.addf %23, %36 : vector<16x16xf32>
      %c0_42 = arith.constant 0 : index
      %c0_43 = arith.constant 0 : index
      %c1_44 = arith.constant 1 : index
      %c0_45 = arith.constant 0 : index
      %38 = vector.load %arg7[%c0_42, %c0_43, %c1_44, %c0_45] : memref<1x2x22x16xf32, #tpu.memory_space<vmem>>, vector<1x1x16x16xf32>
      %39 = vector.shape_cast %38 : vector<1x1x16x16xf32> to vector<1x16x16xf32>
      %40 = vector.shape_cast %39 : vector<1x16x16xf32> to vector<16x16xf32>
      %c0_46 = arith.constant 0 : index
      %c1_47 = arith.constant 1 : index
      %c1_48 = arith.constant 1 : index
      %c0_49 = arith.constant 0 : index
      %41 = vector.load %arg7[%c0_46, %c1_47, %c1_48, %c0_49] : memref<1x2x22x16xf32, #tpu.memory_space<vmem>>, vector<1x1x16x16xf32>
      %42 = vector.shape_cast %41 : vector<1x1x16x16xf32> to vector<1x16x16xf32>
      %43 = vector.shape_cast %42 : vector<1x16x16xf32> to vector<16x16xf32>
      %c0_50 = arith.constant 0 : index
      %c1_51 = arith.constant 1 : index
      %c0_52 = arith.constant 0 : index
      %c0_53 = arith.constant 0 : index
      %44 = vector.load %arg3[%c0_50, %c1_51, %c0_52, %c0_53] : memref<2x7x16x16xf32, #tpu.memory_space<vmem>>, vector<1x1x16x16xf32>
      %45 = vector.shape_cast %44 : vector<1x1x16x16xf32> to vector<16x16xf32>
      %cst_54 = arith.constant dense<0.000000e+00> : vector<16x16xf32>
      %46 = tpu.matmul %40, %45, %cst_54 {dimension_numbers = #tpu.dot_dimension_numbers<[1], [0], [0], [1], [0, 0, 1, 1], [], []>} : vector<16x16xf32>, vector<16x16xf32>, vector<16x16xf32> -> vector<16x16xf32>
      %47 = arith.addf %33, %46 : vector<16x16xf32>
      %c1_55 = arith.constant 1 : index
      %c1_56 = arith.constant 1 : index
      %c0_57 = arith.constant 0 : index
      %c0_58 = arith.constant 0 : index
      %48 = vector.load %arg3[%c1_55, %c1_56, %c0_57, %c0_58] : memref<2x7x16x16xf32, #tpu.memory_space<vmem>>, vector<1x1x16x16xf32>
      %49 = vector.shape_cast %48 : vector<1x1x16x16xf32> to vector<16x16xf32>
      %cst_59 = arith.constant dense<0.000000e+00> : vector<16x16xf32>
      %50 = tpu.matmul %43, %49, %cst_59 {dimension_numbers = #tpu.dot_dimension_numbers<[1], [0], [0], [1], [0, 0, 1, 1], [], []>} : vector<16x16xf32>, vector<16x16xf32>, vector<16x16xf32> -> vector<16x16xf32>
      %51 = arith.addf %37, %50 : vector<16x16xf32>
      %c0_60 = arith.constant 0 : index
      %c0_61 = arith.constant 0 : index
      %c2 = arith.constant 2 : index
      %c0_62 = arith.constant 0 : index
      %52 = vector.load %arg7[%c0_60, %c0_61, %c2, %c0_62] : memref<1x2x22x16xf32, #tpu.memory_space<vmem>>, vector<1x1x16x16xf32>
      %53 = vector.shape_cast %52 : vector<1x1x16x16xf32> to vector<1x16x16xf32>
      %54 = vector.shape_cast %53 : vector<1x16x16xf32> to vector<16x16xf32>
      %c0_63 = arith.constant 0 : index
      %c1_64 = arith.constant 1 : index
      %c2_65 = arith.constant 2 : index
      %c0_66 = arith.constant 0 : index
      %55 = vector.load %arg7[%c0_63, %c1_64, %c2_65, %c0_66] : memref<1x2x22x16xf32, #tpu.memory_space<vmem>>, vector<1x1x16x16xf32>
      %56 = vector.shape_cast %55 : vector<1x1x16x16xf32> to vector<1x16x16xf32>
      %57 = vector.shape_cast %56 : vector<1x16x16xf32> to vector<16x16xf32>
      %c0_67 = arith.constant 0 : index
      %c2_68 = arith.constant 2 : index
      %c0_69 = arith.constant 0 : index
      %c0_70 = arith.constant 0 : index
      %58 = vector.load %arg3[%c0_67, %c2_68, %c0_69, %c0_70] : memref<2x7x16x16xf32, #tpu.memory_space<vmem>>, vector<1x1x16x16xf32>
      %59 = vector.shape_cast %58 : vector<1x1x16x16xf32> to vector<16x16xf32>
      %cst_71 = arith.constant dense<0.000000e+00> : vector<16x16xf32>
      %60 = tpu.matmul %54, %59, %cst_71 {dimension_numbers = #tpu.dot_dimension_numbers<[1], [0], [0], [1], [0, 0, 1, 1], [], []>} : vector<16x16xf32>, vector<16x16xf32>, vector<16x16xf32> -> vector<16x16xf32>
      %61 = arith.addf %47, %60 : vector<16x16xf32>
      %c1_72 = arith.constant 1 : index
      %c2_73 = arith.constant 2 : index
      %c0_74 = arith.constant 0 : index
      %c0_75 = arith.constant 0 : index
      %62 = vector.load %arg3[%c1_72, %c2_73, %c0_74, %c0_75] : memref<2x7x16x16xf32, #tpu.memory_space<vmem>>, vector<1x1x16x16xf32>
      %63 = vector.shape_cast %62 : vector<1x1x16x16xf32> to vector<16x16xf32>
      %cst_76 = arith.constant dense<0.000000e+00> : vector<16x16xf32>
      %64 = tpu.matmul %57, %63, %cst_76 {dimension_numbers = #tpu.dot_dimension_numbers<[1], [0], [0], [1], [0, 0, 1, 1], [], []>} : vector<16x16xf32>, vector<16x16xf32>, vector<16x16xf32> -> vector<16x16xf32>
      %65 = arith.addf %51, %64 : vector<16x16xf32>
      %c0_77 = arith.constant 0 : index
      %c0_78 = arith.constant 0 : index
      %c3_79 = arith.constant 3 : index
      %c0_80 = arith.constant 0 : index
      %66 = vector.load %arg7[%c0_77, %c0_78, %c3_79, %c0_80] : memref<1x2x22x16xf32, #tpu.memory_space<vmem>>, vector<1x1x16x16xf32>
      %67 = vector.shape_cast %66 : vector<1x1x16x16xf32> to vector<1x16x16xf32>
      %68 = vector.shape_cast %67 : vector<1x16x16xf32> to vector<16x16xf32>
      %c0_81 = arith.constant 0 : index
      %c1_82 = arith.constant 1 : index
      %c3_83 = arith.constant 3 : index
      %c0_84 = arith.constant 0 : index
      %69 = vector.load %arg7[%c0_81, %c1_82, %c3_83, %c0_84] : memref<1x2x22x16xf32, #tpu.memory_space<vmem>>, vector<1x1x16x16xf32>
      %70 = vector.shape_cast %69 : vector<1x1x16x16xf32> to vector<1x16x16xf32>
      %71 = vector.shape_cast %70 : vector<1x16x16xf32> to vector<16x16xf32>
      %c0_85 = arith.constant 0 : index
      %c3_86 = arith.constant 3 : index
      %c0_87 = arith.constant 0 : index
      %c0_88 = arith.constant 0 : index
      %72 = vector.load %arg3[%c0_85, %c3_86, %c0_87, %c0_88] : memref<2x7x16x16xf32, #tpu.memory_space<vmem>>, vector<1x1x16x16xf32>
      %73 = vector.shape_cast %72 : vector<1x1x16x16xf32> to vector<16x16xf32>
      %cst_89 = arith.constant dense<0.000000e+00> : vector<16x16xf32>
      %74 = tpu.matmul %68, %73, %cst_89 {dimension_numbers = #tpu.dot_dimension_numbers<[1], [0], [0], [1], [0, 0, 1, 1], [], []>} : vector<16x16xf32>, vector<16x16xf32>, vector<16x16xf32> -> vector<16x16xf32>
      %75 = arith.addf %61, %74 : vector<16x16xf32>
      %c1_90 = arith.constant 1 : index
      %c3_91 = arith.constant 3 : index
      %c0_92 = arith.constant 0 : index
      %c0_93 = arith.constant 0 : index
      %76 = vector.load %arg3[%c1_90, %c3_91, %c0_92, %c0_93] : memref<2x7x16x16xf32, #tpu.memory_space<vmem>>, vector<1x1x16x16xf32>
      %77 = vector.shape_cast %76 : vector<1x1x16x16xf32> to vector<16x16xf32>
      %cst_94 = arith.constant dense<0.000000e+00> : vector<16x16xf32>
      %78 = tpu.matmul %71, %77, %cst_94 {dimension_numbers = #tpu.dot_dimension_numbers<[1], [0], [0], [1], [0, 0, 1, 1], [], []>} : vector<16x16xf32>, vector<16x16xf32>, vector<16x16xf32> -> vector<16x16xf32>
      %79 = arith.addf %65, %78 : vector<16x16xf32>
      %c0_95 = arith.constant 0 : index
      %c0_96 = arith.constant 0 : index
      %c4 = arith.constant 4 : index
      %c0_97 = arith.constant 0 : index
      %80 = vector.load %arg7[%c0_95, %c0_96, %c4, %c0_97] : memref<1x2x22x16xf32, #tpu.memory_space<vmem>>, vector<1x1x16x16xf32>
      %81 = vector.shape_cast %80 : vector<1x1x16x16xf32> to vector<1x16x16xf32>
      %82 = vector.shape_cast %81 : vector<1x16x16xf32> to vector<16x16xf32>
      %c0_98 = arith.constant 0 : index
      %c1_99 = arith.constant 1 : index
      %c4_100 = arith.constant 4 : index
      %c0_101 = arith.constant 0 : index
      %83 = vector.load %arg7[%c0_98, %c1_99, %c4_100, %c0_101] : memref<1x2x22x16xf32, #tpu.memory_space<vmem>>, vector<1x1x16x16xf32>
      %84 = vector.shape_cast %83 : vector<1x1x16x16xf32> to vector<1x16x16xf32>
      %85 = vector.shape_cast %84 : vector<1x16x16xf32> to vector<16x16xf32>
      %c0_102 = arith.constant 0 : index
      %c4_103 = arith.constant 4 : index
      %c0_104 = arith.constant 0 : index
      %c0_105 = arith.constant 0 : index
      %86 = vector.load %arg3[%c0_102, %c4_103, %c0_104, %c0_105] : memref<2x7x16x16xf32, #tpu.memory_space<vmem>>, vector<1x1x16x16xf32>
      %87 = vector.shape_cast %86 : vector<1x1x16x16xf32> to vector<16x16xf32>
      %cst_106 = arith.constant dense<0.000000e+00> : vector<16x16xf32>
      %88 = tpu.matmul %82, %87, %cst_106 {dimension_numbers = #tpu.dot_dimension_numbers<[1], [0], [0], [1], [0, 0, 1, 1], [], []>} : vector<16x16xf32>, vector<16x16xf32>, vector<16x16xf32> -> vector<16x16xf32>
      %89 = arith.addf %75, %88 : vector<16x16xf32>
      %c1_107 = arith.constant 1 : index
      %c4_108 = arith.constant 4 : index
      %c0_109 = arith.constant 0 : index
      %c0_110 = arith.constant 0 : index
      %90 = vector.load %arg3[%c1_107, %c4_108, %c0_109, %c0_110] : memref<2x7x16x16xf32, #tpu.memory_space<vmem>>, vector<1x1x16x16xf32>
      %91 = vector.shape_cast %90 : vector<1x1x16x16xf32> to vector<16x16xf32>
      %cst_111 = arith.constant dense<0.000000e+00> : vector<16x16xf32>
      %92 = tpu.matmul %85, %91, %cst_111 {dimension_numbers = #tpu.dot_dimension_numbers<[1], [0], [0], [1], [0, 0, 1, 1], [], []>} : vector<16x16xf32>, vector<16x16xf32>, vector<16x16xf32> -> vector<16x16xf32>
      %93 = arith.addf %79, %92 : vector<16x16xf32>
      %c0_112 = arith.constant 0 : index
      %c0_113 = arith.constant 0 : index
      %c5 = arith.constant 5 : index
      %c0_114 = arith.constant 0 : index
      %94 = vector.load %arg7[%c0_112, %c0_113, %c5, %c0_114] : memref<1x2x22x16xf32, #tpu.memory_space<vmem>>, vector<1x1x16x16xf32>
      %95 = vector.shape_cast %94 : vector<1x1x16x16xf32> to vector<1x16x16xf32>
      %96 = vector.shape_cast %95 : vector<1x16x16xf32> to vector<16x16xf32>
      %c0_115 = arith.constant 0 : index
      %c1_116 = arith.constant 1 : index
      %c5_117 = arith.constant 5 : index
      %c0_118 = arith.constant 0 : index
      %97 = vector.load %arg7[%c0_115, %c1_116, %c5_117, %c0_118] : memref<1x2x22x16xf32, #tpu.memory_space<vmem>>, vector<1x1x16x16xf32>
      %98 = vector.shape_cast %97 : vector<1x1x16x16xf32> to vector<1x16x16xf32>
      %99 = vector.shape_cast %98 : vector<1x16x16xf32> to vector<16x16xf32>
      %c0_119 = arith.constant 0 : index
      %c5_120 = arith.constant 5 : index
      %c0_121 = arith.constant 0 : index
      %c0_122 = arith.constant 0 : index
      %100 = vector.load %arg3[%c0_119, %c5_120, %c0_121, %c0_122] : memref<2x7x16x16xf32, #tpu.memory_space<vmem>>, vector<1x1x16x16xf32>
      %101 = vector.shape_cast %100 : vector<1x1x16x16xf32> to vector<16x16xf32>
      %cst_123 = arith.constant dense<0.000000e+00> : vector<16x16xf32>
      %102 = tpu.matmul %96, %101, %cst_123 {dimension_numbers = #tpu.dot_dimension_numbers<[1], [0], [0], [1], [0, 0, 1, 1], [], []>} : vector<16x16xf32>, vector<16x16xf32>, vector<16x16xf32> -> vector<16x16xf32>
      %103 = arith.addf %89, %102 : vector<16x16xf32>
      %c1_124 = arith.constant 1 : index
      %c5_125 = arith.constant 5 : index
      %c0_126 = arith.constant 0 : index
      %c0_127 = arith.constant 0 : index
      %104 = vector.load %arg3[%c1_124, %c5_125, %c0_126, %c0_127] : memref<2x7x16x16xf32, #tpu.memory_space<vmem>>, vector<1x1x16x16xf32>
      %105 = vector.shape_cast %104 : vector<1x1x16x16xf32> to vector<16x16xf32>
      %cst_128 = arith.constant dense<0.000000e+00> : vector<16x16xf32>
      %106 = tpu.matmul %99, %105, %cst_128 {dimension_numbers = #tpu.dot_dimension_numbers<[1], [0], [0], [1], [0, 0, 1, 1], [], []>} : vector<16x16xf32>, vector<16x16xf32>, vector<16x16xf32> -> vector<16x16xf32>
      %107 = arith.addf %93, %106 : vector<16x16xf32>
      %c0_129 = arith.constant 0 : index
      %c0_130 = arith.constant 0 : index
      %c6 = arith.constant 6 : index
      %c0_131 = arith.constant 0 : index
      %108 = vector.load %arg7[%c0_129, %c0_130, %c6, %c0_131] : memref<1x2x22x16xf32, #tpu.memory_space<vmem>>, vector<1x1x16x16xf32>
      %109 = vector.shape_cast %108 : vector<1x1x16x16xf32> to vector<1x16x16xf32>
      %110 = vector.shape_cast %109 : vector<1x16x16xf32> to vector<16x16xf32>
      %c0_132 = arith.constant 0 : index
      %c1_133 = arith.constant 1 : index
      %c6_134 = arith.constant 6 : index
      %c0_135 = arith.constant 0 : index
      %111 = vector.load %arg7[%c0_132, %c1_133, %c6_134, %c0_135] : memref<1x2x22x16xf32, #tpu.memory_space<vmem>>, vector<1x1x16x16xf32>
      %112 = vector.shape_cast %111 : vector<1x1x16x16xf32> to vector<1x16x16xf32>
      %113 = vector.shape_cast %112 : vector<1x16x16xf32> to vector<16x16xf32>
      %c0_136 = arith.constant 0 : index
      %c6_137 = arith.constant 6 : index
      %c0_138 = arith.constant 0 : index
      %c0_139 = arith.constant 0 : index
      %114 = vector.load %arg3[%c0_136, %c6_137, %c0_138, %c0_139] : memref<2x7x16x16xf32, #tpu.memory_space<vmem>>, vector<1x1x16x16xf32>
      %115 = vector.shape_cast %114 : vector<1x1x16x16xf32> to vector<16x16xf32>
      %cst_140 = arith.constant dense<0.000000e+00> : vector<16x16xf32>
      %116 = tpu.matmul %110, %115, %cst_140 {dimension_numbers = #tpu.dot_dimension_numbers<[1], [0], [0], [1], [0, 0, 1, 1], [], []>} : vector<16x16xf32>, vector<16x16xf32>, vector<16x16xf32> -> vector<16x16xf32>
      %117 = arith.addf %103, %116 : vector<16x16xf32>
      %c1_141 = arith.constant 1 : index
      %c6_142 = arith.constant 6 : index
      %c0_143 = arith.constant 0 : index
      %c0_144 = arith.constant 0 : index
      %118 = vector.load %arg3[%c1_141, %c6_142, %c0_143, %c0_144] : memref<2x7x16x16xf32, #tpu.memory_space<vmem>>, vector<1x1x16x16xf32>
      %119 = vector.shape_cast %118 : vector<1x1x16x16xf32> to vector<16x16xf32>
      %cst_145 = arith.constant dense<0.000000e+00> : vector<16x16xf32>
      %120 = tpu.matmul %113, %119, %cst_145 {dimension_numbers = #tpu.dot_dimension_numbers<[1], [0], [0], [1], [0, 0, 1, 1], [], []>} : vector<16x16xf32>, vector<16x16xf32>, vector<16x16xf32> -> vector<16x16xf32>
      %121 = arith.addf %107, %120 : vector<16x16xf32>
      %122 = arith.addf %117, %121 : vector<16x16xf32>
      %123 = arith.negf %122 : vector<16x16xf32>
      %124 = math.exp %123 : vector<16x16xf32>
      %cst_146 = arith.constant 1.000000e+00 : f32
      %125 = vector.broadcast %cst_146 : f32 to vector<16x16xf32>
      %126 = arith.addf %125, %124 : vector<16x16xf32>
      %127 = arith.divf %125, %126 : vector<16x16xf32>
      %128 = vector.shape_cast %127 : vector<16x16xf32> to vector<1x1x16x16xf32>
      %c0_147 = arith.constant 0 : index
      %c0_148 = arith.constant 0 : index
      %c0_149 = arith.constant 0 : index
      %c0_150 = arith.constant 0 : index
      %129 = vector.load %arg4[%c0_147, %c0_148, %c0_149, %c0_150] : memref<1x1x16x16xf32, #tpu.memory_space<vmem>>, vector<1x1x16x16xf32>
      tpu.vector_store %arg4[%c0_147, %c0_148, %c0_149, %c0_150], %128 {strides = array<i32>} : memref<1x1x16x16xf32, #tpu.memory_space<vmem>>, vector<1x1x16x16xf32>,
    } else {
    }
    return
  }
  func.func @transform_0(%arg0: i32, %arg1: i32) -> (i32, i32, i32, i32) {
    %c0_i32 = arith.constant 0 : i32
    %c0_i32_0 = arith.constant 0 : i32
    %c0_i32_1 = arith.constant 0 : i32
    return %arg0, %arg1, %c0_i32, %c0_i32_0 : i32, i32, i32, i32
  }
  func.func @transform_1(%arg0: i32, %arg1: i32) -> (i32, i32, i32, i32) {
    %c0_i32 = arith.constant 0 : i32
    %c0_i32_0 = arith.constant 0 : i32
    %c0_i32_1 = arith.constant 0 : i32
    %c0_i32_2 = arith.constant 0 : i32
    %c0_i32_3 = arith.constant 0 : i32
    return %c0_i32, %c0_i32_0, %c0_i32_1, %c0_i32_2 : i32, i32, i32, i32
  }
  func.func @transform_2(%arg0: i32, %arg1: i32) -> (i32, i32, i32, i32) {
    %c0_i32 = arith.constant 0 : i32
    %c0_i32_0 = arith.constant 0 : i32
    %c0_i32_1 = arith.constant 0 : i32
    %c0_i32_2 = arith.constant 0 : i32
    return %arg0, %c0_i32, %c0_i32_0, %c0_i32_1 : i32, i32, i32, i32
  }
}

</mosaic_0001>

<llo_original>
// kernel: tpu_custom_call.1
$region0: #{tpu_custom_call.1}
  #allocation0 [shape = 'u32[]', space=smem, size = 0x4, offset = 0x4, fixed_abs, tag = 'smem constant byte address 0x4 - core index']
  #allocation1 [shape = 'u32[144,128]{1,0:T(1,128)}', space=vmem, size = 0x12000, scoped, tag = 'internal scratch']
  #allocation2 [shape = 'f32[1,16,16]{2,1,0:T(8,128)}', space=vmem, size = 0x2000, scoped, tag = 'scratch operand']
  #allocation3 [shape = 'f32[1,16,16]{2,1,0:T(8,128)}', space=vmem, size = 0x2000, scoped, tag = 'scratch operand']
  #allocation4 [shape = 'f32[1,2,22,16]{3,2,1,0:T(8,128)}', space=vmem, size = 0x6000, scoped, tag = 'scratch operand']
  %s0 = inlined_call_operand.hbm [shape: f32[2,4,16,16], index: 0, kind: input, shape index: {}]
  %s1 = inlined_call_operand.hbm [shape: f32[2,7,16,16], index: 1, kind: input, shape index: {}]
  %s2 = inlined_call_operand.hbm [shape: f32[2,1,16,16], index: 2, kind: output, shape index: {}]
  %s3 = sld [smem:[#allocation0]]
  $region61: #{tpu_custom_call.1} parent=0
    _
  %s5 = ssub.s32 1, %s3
  %s6 = scalar_select 0, %s5, %s3
  $region1: #{tpu_custom_call.1} parent=0
    #allocation5 [shape = 'u8[65536]{0}', space=vmem, size = 0x10000, scoped, tag = 'input window, operand 0']
    #allocation6 [shape = 's32[2]{0}', space=sflag, size = 0x8, scoped, tag = 'scoped memory for tpu_custom_call.1']
    #allocation7 [shape = 's32[2]{0}', space=sflag, size = 0x8, scoped, tag = 'scoped memory for tpu_custom_call.1']
    #allocation8 [shape = 'u8[114688]{0}', space=vmem, size = 0x1c000, scoped, tag = 'input window, operand 1, single buffered']
    #allocation9 [shape = 's32[1]{0}', space=sflag, size = 0x4, scoped, tag = 'scoped memory for tpu_custom_call.1']
    #allocation10 [shape = 'u8[16384]{0}', space=vmem, size = 0x4000, scoped, tag = 'output window, operand 0']
    %7 = vsyncpa [#allocation6], 0
    %s8 = scalar_lea.sflag [#allocation6], 1
    %9 = vsyncpa %s8, 0
    %10 = vsyncpa [#allocation9], 0
    %11 = vsyncpa [#allocation7], 0
    %s12 = scalar_lea.sflag [#allocation7], 1
    %13 = vsyncpa %s12, 0
    loop: start=0, step=1, limit=4
    $region2: #{tpu_custom_call.1} parent=1 // loop_pre_header
      _
    $region3: #{tpu_custom_call.1} parent=1 // loop_header
      %s15 = sphi 0, %s19
      %p16 = scmp.ge.s32.totalorder %s15, 4
      %s22 = sphi 0, %s34
      %s23 = sphi 0, %s30
      %s24 = sphi 0, %s22
      %s25 = sphi 0, %s23
      %s26 = sphi 0, %s24
      %s27 = sphi 0, %s25
      %s39 = sphi 0, %s41
      %s42 = sphi 0, %s39
      %s43 = sphi 0, %s42
      %s59 = sphi 0, %s43
      %s63 = sphi 0, %s63
      %s65 = sphi 0, %s63
      %s66 = sphi 0, %s65
      %s80 = sphi 0, %s66
      %s86 = sphi 0, %s88
      %s89 = sphi 0, %s86
      %s90 = sphi 0, %s89
      %s106 = sphi 0, %s90
    $region4: #{tpu_custom_call.1} parent=1 // loop_header_branch
      %18 = sbr.rel (%p16) target = $region8
    $region5: #{tpu_custom_call.1} parent=1 // loop_body
      %s20 = ssub.s32 %s15, 1
      %s21 = ssub.s32 %s15, 2
      %s28 = sadd.s32 1, %s23
      %p29 = scmp.ge.s32.totalorder %s28, 1
      %s30 = scalar_select %p29, 0, %s28
      %s31 = sadd.s32 1, %s22
      %s32 = scalar_select %p29, %s31, %s22
      %p33 = scmp.ge.s32.totalorder %s32, 2
      %s34 = scalar_select %p33, 0, %s32
      %s35 = ssub.s32 %s22, %s34
      %s36 = ssub.s32 %s23, %s30
      %s37 = sor.u32 %s35, %s36
      %p38 = scmp.eq.s32.totalorder %s37, 0
      %s40 = sadd.s32 %s39, 1
      %s41 = scalar_select %p38, %s39, %s40
      %p44 = pneg %p38
      %p45 = scmp.eq.s32.totalorder %s15, 1
      %p46 = por %p44, %p45
      %p47 = scmp.ne.s32.totalorder %s39, %s42
      %p48 = scmp.eq.s32.totalorder %s15, 0
      %p49 = por %p47, %p48
      %p50 = scmp.ne.s32.totalorder %s39, %s42
      %p51 = scmp.eq.s32.totalorder %s20, 1
      %p52 = por %p50, %p51
      %p53 = scmp.ne.s32.totalorder %s42, %s43
      %p54 = scmp.eq.s32.totalorder %s20, 0
      %p55 = por %p53, %p54
      %p56 = scmp.ne.s32.totalorder %s42, %s43
      %p57 = scmp.eq.s32.totalorder %s21, 1
      %p58 = por %p56, %p57
      %p60 = scmp.ne.s32.totalorder %s43, %s59
      %p61 = scmp.eq.s32.totalorder %s21, 0
      %p62 = por %p60, %p61
      %s64 = sadd.s32 %s63, 1
      %p67 = scmp.eq.s32.totalorder %s15, 1
      %p68 = scmp.ne.s32.totalorder %s63, %s65
      %p69 = scmp.eq.s32.totalorder %s15, 0
      %p70 = por %p68, %p69
      %p71 = scmp.ne.s32.totalorder %s63, %s65
      %p72 = scmp.eq.s32.totalorder %s20, 1
      %p73 = por %p71, %p72
      %p74 = scmp.ne.s32.totalorder %s65, %s66
      %p75 = scmp.eq.s32.totalorder %s20, 0
      %p76 = por %p74, %p75
      %p77 = scmp.ne.s32.totalorder %s65, %s66
      %p78 = scmp.eq.s32.totalorder %s21, 1
      %p79 = por %p77, %p78
      %p81 = scmp.ne.s32.totalorder %s66, %s80
      %p82 = scmp.eq.s32.totalorder %s21, 0
      %p83 = por %p81, %p82
      %s84 = ssub.s32 %s22, %s34
      %p85 = scmp.eq.s32.totalorder %s84, 0
      %s87 = sadd.s32 %s86, 1
      %s88 = scalar_select %p85, %s86, %s87
      %p91 = pneg %p85
      %p92 = scmp.eq.s32.totalorder %s15, 1
      %p93 = por %p91, %p92
      %p94 = scmp.ne.s32.totalorder %s86, %s89
      %p95 = scmp.eq.s32.totalorder %s15, 0
      %p96 = por %p94, %p95
      %p97 = scmp.ne.s32.totalorder %s86, %s89
      %p98 = scmp.eq.s32.totalorder %s20, 1
      %p99 = por %p97, %p98
      %p100 = scmp.ne.s32.totalorder %s89, %s90
      %p101 = scmp.eq.s32.totalorder %s20, 0
      %p102 = por %p100, %p101
      %p103 = scmp.ne.s32.totalorder %s89, %s90
      %p104 = scmp.eq.s32.totalorder %s21, 1
      %p105 = por %p103, %p104
      %p107 = scmp.ne.s32.totalorder %s90, %s106
      %p108 = scmp.eq.s32.totalorder %s21, 0
      %p109 = por %p107, %p108
      %p110 = scmp.le.s32.totalorder 1, %s15
      %p111 = scmp.lt.s32.totalorder %s15, 3
      %p112 = pnand %p110, %p111
      %p113 = pneg %p112
      // Predicated region
      $region9: #{tpu_custom_call.1} parent=5 // pred_check
        _
      $region10: #{tpu_custom_call.1} parent=5 // pred_check_branch
        %115 = sbr.rel (%p112) target = $region12
      $region11: #{tpu_custom_call.1} parent=5 // pred_region
        %s116 = ssub.s32 %s15, 1
        // Predicated region
        $region13: #{tpu_custom_call.1} parent=11 // pred_check
          %p117 = pneg %p76
        $region14: #{tpu_custom_call.1} parent=11 // pred_check_branch
          %119 = sbr.rel (%p117) target = $region16
        $region15: #{tpu_custom_call.1} parent=11 // pred_region
          %s121 = ssub.s32 3584, 3584
          %122 = vsyncadd [#allocation9], %s121
          %s123 = sshll.u32 [#allocation8], 4
          %s124 = int_to_ptr.vmem [resolvable:$true] %s123
          %129 = dma.hbm_to_vmem [thread:$0]  %s1, 3584, %s124, [#allocation9], 128, 128, 8
        $region16: #{tpu_custom_call.1} parent=11 // pred_fallthru
          _
      $region12: #{tpu_custom_call.1} parent=5 // pred_fallthru
        _
      %p130 = scmp.lt.s32.totalorder %s15, 2
      // Predicated region
      $region17: #{tpu_custom_call.1} parent=5 // pred_check
        %p131 = pneg %p130
      $region18: #{tpu_custom_call.1} parent=5 // pred_check_branch
        %133 = sbr.rel (%p131) target = $region20
      $region19: #{tpu_custom_call.1} parent=5 // pred_region
        // Predicated region
        $region21: #{tpu_custom_call.1} parent=19 // pred_check
          %p134 = pneg %p49
        $region22: #{tpu_custom_call.1} parent=19 // pred_check_branch
          %136 = sbr.rel (%p134) target = $region24
        $region23: #{tpu_custom_call.1} parent=19 // pred_region
          %s137 = sand.u32 %s39, 1
          %s138 = scalar_lea.sflag [#allocation6], %s137
          %s139 = sand.u32 %s39, 1
          %s140 = smul.addr %s139, 64
          %s141 = scalar_lea.vmem [#allocation5], %s140
          %s142 = smul.u32 4, %s23
          %s144 = ssub.s32 1024, 1024
          %145 = vsyncadd %s138, %s144
          %s146 = smul.addr %s142, 2
          %s147 = smul.addr %s22, 8
          %s148 = sadd.s32 %s146, %s147
          %s149 = smul.addr %s148, 128
          %s150 = scalar_lea.hbm %s0, %s149
          %s151 = sshll.u32 %s141, 4
          %s152 = int_to_ptr.vmem [resolvable:$true] %s151
          %157 = dma.hbm_to_vmem [thread:$0]  %s150, 1024, %s152, %s138, 128, 128, 8
        $region24: #{tpu_custom_call.1} parent=19 // pred_fallthru
          _
      $region20: #{tpu_custom_call.1} parent=5 // pred_fallthru
        _
      %p158 = scmp.le.s32.totalorder 1, %s15
      %p159 = scmp.lt.s32.totalorder %s15, 3
      %p160 = pnand %p158, %p159
      %p161 = pneg %p160
      // Predicated region
      $region25: #{tpu_custom_call.1} parent=5 // pred_check
        _
      $region26: #{tpu_custom_call.1} parent=5 // pred_check_branch
        %163 = sbr.rel (%p160) target = $region28
      $region27: #{tpu_custom_call.1} parent=5 // pred_region
        %s164 = ssub.s32 %s15, 1
        %s165 = sand.u32 %s42, 1
        %s166 = scalar_lea.sflag [#allocation6], %s165
        %s167 = sand.u32 %s42, 1
        %s168 = smul.addr %s167, 64
        %s169 = scalar_lea.vmem [#allocation5], %s168
        // Predicated region
        $region29: #{tpu_custom_call.1} parent=27 // pred_check
          %p170 = pneg %p55
        $region30: #{tpu_custom_call.1} parent=27 // pred_check_branch
          %172 = sbr.rel (%p170) target = $region32
        $region31: #{tpu_custom_call.1} parent=27 // pred_region
          %173 = dma.done %s166, 1024
        $region32: #{tpu_custom_call.1} parent=27 // pred_fallthru
          _
        // Predicated region
        $region33: #{tpu_custom_call.1} parent=27 // pred_check
          %p174 = pneg %p76
        $region34: #{tpu_custom_call.1} parent=27 // pred_check_branch
          %176 = sbr.rel (%p174) target = $region36
        $region35: #{tpu_custom_call.1} parent=27 // pred_region
          %177 = dma.done [#allocation9], 3584
        $region36: #{tpu_custom_call.1} parent=27 // pred_fallthru
          _
        %s178 = sand.u32 %s42, 1
        %s179 = scalar_lea.sflag [#allocation6], %s178
        %s180 = sand.u32 %s42, 1
        %s181 = smul.addr %s180, 64
        %s182 = scalar_lea.vmem [#allocation5], %s181
        %p183 = pneg %p55
        %p184 = pneg %p52
        %p185 = pneg %p76
        %p186 = pneg %p73
        %p187 = pneg %p102
        %p188 = pneg %p99
        %s189 = sand.u32 %s89, 1
        %s190 = scalar_lea.sflag [#allocation7], %s189
        %s191 = sand.u32 %s89, 1
        %s192 = smul.addr %s191, 16
        %s193 = scalar_lea.vmem [#allocation10], %s192
        %s194 = smul.u32 4, %s25
        %v195 = vld [vmem:[%s169] sm:$0xff]
        %v196 = vld [vmem:[%s169 + $0x8] sm:$0xff]
        %v197 = vld [vmem:[%s169 + $0x10] sm:$0xff]
        %v198 = vld [vmem:[%s169 + $0x18] sm:$0xff]
        %v199 = vld [vmem:[%s169 + $0x20] sm:$0xff]
        %v200 = vld [vmem:[%s169 + $0x28] sm:$0xff]
        %v201 = vld [vmem:[%s169 + $0x30] sm:$0xff]
        %v202 = vld [vmem:[%s169 + $0x38] sm:$0xff]
        %vm203 = vcmask 130048
        %v204 = vsel %vm203, %v195, 0.0
        %v205 = vsel %vm203, %v197, 0.0
        %v206 = vadd.f32 %v204, %v205
        %v207 = vsel %vm203, %v199, 0.0
        %v208 = vadd.f32 %v206, %v207
        %v209 = vsel %vm203, %v201, 0.0
        %v210 = vadd.f32 %v208, %v209
        %v211 = vsel %vm203, %v196, 0.0
        %v212 = vsel %vm203, %v198, 0.0
        %v213 = vadd.f32 %v211, %v212
        %v214 = vsel %vm203, %v200, 0.0
        %v215 = vadd.f32 %v213, %v214
        %v216 = vsel %vm203, %v202, 0.0
        %v217 = vadd.f32 %v215, %v216
        %v218 = vsel %vm203, %v195, -inf
        %v219 = vsel %vm203, %v197, -inf
        %v220 = vsel %vm203, %v199, -inf
        %v221 = vmax.f32 %v218, %v220
        %v222 = vsel %vm203, %v201, -inf
        %v223 = vmax.f32 %v219, %v222
        %v224 = vmax.f32 %v221, %v223
        %v225 = vsel %vm203, %v196, -inf
        %v226 = vsel %vm203, %v198, -inf
        %v227 = vsel %vm203, %v200, -inf
        %v228 = vmax.f32 %v225, %v227
        %v229 = vsel %vm203, %v202, -inf
        %v230 = vmax.f32 %v226, %v229
        %v231 = vmax.f32 %v228, %v230
        %p232 = scmp.eq.s32.totalorder %s25, 0
        // Predicated region
        $region37: #{tpu_custom_call.1} parent=27 // pred_check
          %p233 = pneg %p232
        $region38: #{tpu_custom_call.1} parent=27 // pred_check_branch
          %235 = sbr.rel (%p233) target = $region40
        $region39: #{tpu_custom_call.1} parent=27 // pred_region
          %236 = vst.msk [vmem:[#allocation2] sm:$0xff] %vm203, %v210
          %237 = vst.msk [vmem:[#allocation2 + $0x8] sm:$0xff] %vm203, %v217
          %238 = vst.msk [vmem:[#allocation3] sm:$0xff] %vm203, %v224
          %239 = vst.msk [vmem:[#allocation3 + $0x8] sm:$0xff] %vm203, %v231
          %vm240 = vcmask 124928
          %241 = vst.msk [vmem:[#allocation4] sm:$0x7] %vm240, 0.0
          %242 = vst.msk [vmem:[#allocation4 + $0x18] sm:$0x7] %vm240, 0.0
          %243 = vst.msk [vmem:[#allocation4 + $0x13] sm:$0x7] %vm240, 0.0
          %244 = vst.msk [vmem:[#allocation4 + $0x2b] sm:$0x7] %vm240, 0.0
        $region40: #{tpu_custom_call.1} parent=27 // pred_fallthru
          _
        %p245 = scmp.ne.s32.totalorder %s25, 0
        // Predicated region
        $region41: #{tpu_custom_call.1} parent=27 // pred_check
          %p246 = pneg %p245
        $region42: #{tpu_custom_call.1} parent=27 // pred_check_branch
          %248 = sbr.rel (%p246) target = $region44
        $region43: #{tpu_custom_call.1} parent=27 // pred_region
          %v249 = vld [vmem:[#allocation2] sm:$0xff]
          %v250 = vld [vmem:[#allocation2 + $0x8] sm:$0xff]
          %v251 = vadd.f32 %v249, %v210
          %v252 = vadd.f32 %v250, %v217
          %253 = vst.msk [vmem:[#allocation2] sm:$0xff] %vm203, %v251
          %254 = vst.msk [vmem:[#allocation2 + $0x8] sm:$0xff] %vm203, %v252
          %v255 = vld [vmem:[#allocation3] sm:$0xff]
          %v256 = vld [vmem:[#allocation3 + $0x8] sm:$0xff]
          %v257 = vmax.f32 %v255, %v224
          %v258 = vmax.f32 %v256, %v231
          %259 = vst.msk [vmem:[#allocation3] sm:$0xff] %vm203, %v257
          %260 = vst.msk [vmem:[#allocation3 + $0x8] sm:$0xff] %vm203, %v258
        $region44: #{tpu_custom_call.1} parent=27 // pred_fallthru
          _
        // Predicated region
        $region45: #{tpu_custom_call.1} parent=27 // pred_check
          %p261 = pneg %p232
        $region46: #{tpu_custom_call.1} parent=27 // pred_check_branch
          %263 = sbr.rel (%p261) target = $region48
        $region47: #{tpu_custom_call.1} parent=27 // pred_region
          %v264 = vld [vmem:[#allocation2] sm:$0xff]
          %v265 = vld [vmem:[#allocation2 + $0x8] sm:$0xff]
          %v266 = vmul.f32 %v264, 0.25
          %v267 = vmul.f32 %v265, 0.25
          %268 = vst.msk [vmem:[#allocation4 + $0x3] sm:$0xff] %vm203, %v266
          %269 = vst.msk [vmem:[#allocation4 + $0xb] sm:$0xff] %vm203, %v267
          %v270 = vld [vmem:[#allocation3] sm:$0xff]
          %v271 = vld [vmem:[#allocation3 + $0x8] sm:$0xff]
          %s272 = scalar_lea.vmem [#allocation4], 24
          %273 = vst.msk [vmem:[%s272 + $0x3] sm:$0xff] %vm203, %v270
          %274 = vst.msk [vmem:[%s272 + $0xb] sm:$0xff] %vm203, %v271
          %v275 = vld [vmem:[#allocation4] sm:$0xff]
          %v276 = vld [vmem:[#allocation4 + $0x8] sm:$0xff]
          %v277 = vld [vmem:[%s272] sm:$0xff]
          %v278 = vld [vmem:[%s272 + $0x8] sm:$0xff]
          %v279 = vld [vmem:[#allocation8] sm:$0xff]
          %v280 = vld [vmem:[#allocation8 + $0x8] sm:$0xff]
          %s281 = scalar_lea.vmem [#allocation8], 112
          %v282 = vld [vmem:[%s281] sm:$0xff]
          %v283 = vld [vmem:[%s281 + $0x8] sm:$0xff]
          %v284 = vld [vmem:[#allocation4 + $0x1] sm:$0xff]
          %v285 = vld [vmem:[#allocation4 + $0x9] sm:$0xff]
          %v286 = vld [vmem:[%s272 + $0x1] sm:$0xff]
          %v287 = vld [vmem:[%s272 + $0x9] sm:$0xff]
          %s288 = scalar_lea.vmem [#allocation8], 16
          %v289 = vld [vmem:[%s288] sm:$0xff]
          %v290 = vld [vmem:[%s288 + $0x8] sm:$0xff]
          %v292 = vsel %vm203, %v284, 0
          %v295 = vsel %vm203, %v285, 0
          %297 = vmatprep.subr.mxu0 0.0
          %298 = vmatpush1.msra.mxu0 %v289
          %299 = vmatprep.subr.mxu0 0.0
          %300 = vmatpush1.msra.mxu0 %v290
          %301 = vmatprep.subr.mxu0 0.0
          %302 = vmatpush1.msra.mxu0 0.0
          %303 = vmatprep.subr.mxu0 0.0
          %304 = vmatpush1.msra.mxu0 0.0
          %305 = vmatprep.subr.mxu0 0.0
          %306 = vmatpush1.msra.mxu0 0.0
          %307 = vmatprep.subr.mxu0 0.0
          %308 = vmatpush1.msra.mxu0 0.0
          %309 = vmatprep.subr.mxu0 0.0
          %310 = vmatpush1.msra.mxu0 0.0
          %311 = vmatprep.subr.mxu0 0.0
          %312 = vmatpush1.msra.mxu0 0.0
          %313 = vmatprep.subr.mxu0 0.0
          %314 = vmatpush1.msra.mxu0 0.0
          %315 = vmatprep.subr.mxu0 0.0
          %316 = vmatpush1.msra.mxu0 0.0
          %317 = vmatprep.subr.mxu0 0.0
          %318 = vmatpush1.msra.mxu0 0.0
          %319 = vmatprep.subr.mxu0 0.0
          %320 = vmatpush1.msra.mxu0 0.0
          %321 = vmatprep.subr.mxu0 0.0
          %322 = vmatpush1.msra.mxu0 0.0
          %323 = vmatprep.subr.mxu0 0.0
          %324 = vmatpush1.msra.mxu0 0.0
          %325 = vmatprep.subr.mxu0 0.0
          %326 = vmatpush1.msra.mxu0 0.0
          %327 = vmatprep.subr.mxu0 0.0
          %328 = vmatpush1.msra.mxu0 0.0
          %329 = vmatprep.subr.mxu0 0.0
          %330 = vmatpush1.msra.mxu0 0.0
          %331 = vmatprep.subr.mxu0 0.0
          %332 = vmatpush1.msra.mxu0 0.0
          %333 = vmatprep.subr.mxu0 0.0
          %334 = vmatpush1.msra.mxu0 0.0
          %335 = vmatprep.subr.mxu0 0.0
          %336 = vmatpush1.msra.mxu0 0.0
          %337 = vmatprep.subr.mxu0 0.0
          %338 = vmatpush1.msra.mxu0 0.0
          %339 = vmatprep.subr.mxu0 0.0
          %340 = vmatpush1.msra.mxu0 0.0
          %341 = vmatprep.subr.mxu0 0.0
          %342 = vmatpush1.msra.mxu0 0.0
          %343 = vmatprep.subr.mxu0 0.0
          %344 = vmatpush1.msra.mxu0 0.0
          %345 = vmatprep.subr.mxu0 0.0
          %346 = vmatpush1.msra.mxu0 0.0
          %347 = vmatprep.subr.mxu0 0.0
          %348 = vmatpush1.msra.mxu0 0.0
          %349 = vmatprep.subr.mxu0 0.0
          %350 = vmatpush1.msra.mxu0 0.0
          %351 = vmatprep.subr.mxu0 0.0
          %352 = vmatpush1.msra.mxu0 0.0
          %353 = vmatprep.subr.mxu0 0.0
          %354 = vmatpush1.msra.mxu0 0.0
          %355 = vmatprep.subr.mxu0 0.0
          %356 = vmatpush1.msra.mxu0 0.0
          %357 = vmatprep.subr.mxu0 0.0
          %358 = vmatpush1.msra.mxu0 0.0
          %359 = vmatprep.subr.mxu0 0.0
          %360 = vmatpush1.msra.mxu0 0.0
          %361 = vmatprep.mubr.f32.mxu0 0.0
          %362 = vmatmul.mubr.f32.gmra.mrb[0].mxu0 %v292
          %v363 = vpop.f32.mrb[0].mxu0
          %v364 = vadd.f32 0.0, %v363
          %v365 = vpop.f32.mrb[0].mxu0
          %366 = vmatprep.mubr.f32.mxu0 0.0
          %367 = vmatmul.mubr.f32.gmra.mrb[0].mxu0 %v295
          %v368 = vpop.f32.mrb[0].mxu0
          %v369 = vadd.f32 0.0, %v368
          %v370 = vpop.f32.mrb[0].mxu0
          %371 = vdwg.mxu0
          %v373 = vsel %vm203, %v275, 0
          %v376 = vsel %vm203, %v276, 0
          %378 = vmatprep.subr.mxu0 0.0
          %379 = vmatpush1.msra.mxu0 %v279
          %380 = vmatprep.subr.mxu0 0.0
          %381 = vmatpush1.msra.mxu0 %v280
          %382 = vmatprep.subr.mxu0 0.0
          %383 = vmatpush1.msra.mxu0 0.0
          %384 = vmatprep.subr.mxu0 0.0
          %385 = vmatpush1.msra.mxu0 0.0
          %386 = vmatprep.subr.mxu0 0.0
          %387 = vmatpush1.msra.mxu0 0.0
          %388 = vmatprep.subr.mxu0 0.0
          %389 = vmatpush1.msra.mxu0 0.0
          %390 = vmatprep.subr.mxu0 0.0
          %391 = vmatpush1.msra.mxu0 0.0
          %392 = vmatprep.subr.mxu0 0.0
          %393 = vmatpush1.msra.mxu0 0.0
          %394 = vmatprep.subr.mxu0 0.0
          %395 = vmatpush1.msra.mxu0 0.0
          %396 = vmatprep.subr.mxu0 0.0
          %397 = vmatpush1.msra.mxu0 0.0
          %398 = vmatprep.subr.mxu0 0.0
          %399 = vmatpush1.msra.mxu0 0.0
          %400 = vmatprep.subr.mxu0 0.0
          %401 = vmatpush1.msra.mxu0 0.0
          %402 = vmatprep.subr.mxu0 0.0
          %403 = vmatpush1.msra.mxu0 0.0
          %404 = vmatprep.subr.mxu0 0.0
          %405 = vmatpush1.msra.mxu0 0.0
          %406 = vmatprep.subr.mxu0 0.0
          %407 = vmatpush1.msra.mxu0 0.0
          %408 = vmatprep.subr.mxu0 0.0
          %409 = vmatpush1.msra.mxu0 0.0
          %410 = vmatprep.subr.mxu0 0.0
          %411 = vmatpush1.msra.mxu0 0.0
          %412 = vmatprep.subr.mxu0 0.0
          %413 = vmatpush1.msra.mxu0 0.0
          %414 = vmatprep.subr.mxu0 0.0
          %415 = vmatpush1.msra.mxu0 0.0
          %416 = vmatprep.subr.mxu0 0.0
          %417 = vmatpush1.msra.mxu0 0.0
          %418 = vmatprep.subr.mxu0 0.0
          %419 = vmatpush1.msra.mxu0 0.0
          %420 = vmatprep.subr.mxu0 0.0
          %421 = vmatpush1.msra.mxu0 0.0
          %422 = vmatprep.subr.mxu0 0.0
          %423 = vmatpush1.msra.mxu0 0.0
          %424 = vmatprep.subr.mxu0 0.0
          %425 = vmatpush1.msra.mxu0 0.0
          %426 = vmatprep.subr.mxu0 0.0
          %427 = vmatpush1.msra.mxu0 0.0
          %428 = vmatprep.subr.mxu0 0.0
          %429 = vmatpush1.msra.mxu0 0.0
          %430 = vmatprep.subr.mxu0 0.0
          %431 = vmatpush1.msra.mxu0 0.0
          %432 = vmatprep.subr.mxu0 0.0
          %433 = vmatpush1.msra.mxu0 0.0
          %434 = vmatprep.subr.mxu0 0.0
          %435 = vmatpush1.msra.mxu0 0.0
          %436 = vmatprep.subr.mxu0 0.0
          %437 = vmatpush1.msra.mxu0 0.0
          %438 = vmatprep.subr.mxu0 0.0
          %439 = vmatpush1.msra.mxu0 0.0
          %440 = vmatprep.subr.mxu0 0.0
          %441 = vmatpush1.msra.mxu0 0.0
          %442 = vmatprep.mubr.f32.mxu0 0.0
          %443 = vmatmul.mubr.f32.gmra.mrb[0].mxu0 %v373
          %v444 = vpop.f32.mrb[0].mxu0
          %v445 = vadd.f32 %v364, %v444
          %v446 = vpop.f32.mrb[0].mxu0
          %447 = vmatprep.mubr.f32.mxu0 0.0
          %448 = vmatmul.mubr.f32.gmra.mrb[0].mxu0 %v376
          %v449 = vpop.f32.mrb[0].mxu0
          %v450 = vadd.f32 %v369, %v449
          %v451 = vpop.f32.mrb[0].mxu0
          %452 = vdwg.mxu0
          %s453 = scalar_lea.vmem [#allocation8], 128
          %v454 = vld [vmem:[%s453] sm:$0xff]
          %v455 = vld [vmem:[%s453 + $0x8] sm:$0xff]
          %v457 = vsel %vm203, %v286, 0
          %v460 = vsel %vm203, %v287, 0
          %462 = vmatprep.subr.mxu0 0.0
          %463 = vmatpush1.msra.mxu0 %v454
          %464 = vmatprep.subr.mxu0 0.0
          %465 = vmatpush1.msra.mxu0 %v455
          %466 = vmatprep.subr.mxu0 0.0
          %467 = vmatpush1.msra.mxu0 0.0
          %468 = vmatprep.subr.mxu0 0.0
          %469 = vmatpush1.msra.mxu0 0.0
          %470 = vmatprep.subr.mxu0 0.0
          %471 = vmatpush1.msra.mxu0 0.0
          %472 = vmatprep.subr.mxu0 0.0
          %473 = vmatpush1.msra.mxu0 0.0
          %474 = vmatprep.subr.mxu0 0.0
          %475 = vmatpush1.msra.mxu0 0.0
          %476 = vmatprep.subr.mxu0 0.0
          %477 = vmatpush1.msra.mxu0 0.0
          %478 = vmatprep.subr.mxu0 0.0
          %479 = vmatpush1.msra.mxu0 0.0
          %480 = vmatprep.subr.mxu0 0.0
          %481 = vmatpush1.msra.mxu0 0.0
          %482 = vmatprep.subr.mxu0 0.0
          %483 = vmatpush1.msra.mxu0 0.0
          %484 = vmatprep.subr.mxu0 0.0
          %485 = vmatpush1.msra.mxu0 0.0
          %486 = vmatprep.subr.mxu0 0.0
          %487 = vmatpush1.msra.mxu0 0.0
          %488 = vmatprep.subr.mxu0 0.0
          %489 = vmatpush1.msra.mxu0 0.0
          %490 = vmatprep.subr.mxu0 0.0
          %491 = vmatpush1.msra.mxu0 0.0
          %492 = vmatprep.subr.mxu0 0.0
          %493 = vmatpush1.msra.mxu0 0.0
          %494 = vmatprep.subr.mxu0 0.0
          %495 = vmatpush1.msra.mxu0 0.0
          %496 = vmatprep.subr.mxu0 0.0
          %497 = vmatpush1.msra.mxu0 0.0
          %498 = vmatprep.subr.mxu0 0.0
          %499 = vmatpush1.msra.mxu0 0.0
          %500 = vmatprep.subr.mxu0 0.0
          %501 = vmatpush1.msra.mxu0 0.0
          %502 = vmatprep.subr.mxu0 0.0
          %503 = vmatpush1.msra.mxu0 0.0
          %504 = vmatprep.subr.mxu0 0.0
          %505 = vmatpush1.msra.mxu0 0.0
          %506 = vmatprep.subr.mxu0 0.0
          %507 = vmatpush1.msra.mxu0 0.0
          %508 = vmatprep.subr.mxu0 0.0
          %509 = vmatpush1.msra.mxu0 0.0
          %510 = vmatprep.subr.mxu0 0.0
          %511 = vmatpush1.msra.mxu0 0.0
          %512 = vmatprep.subr.mxu0 0.0
          %513 = vmatpush1.msra.mxu0 0.0
          %514 = vmatprep.subr.mxu0 0.0
          %515 = vmatpush1.msra.mxu0 0.0
          %516 = vmatprep.subr.mxu0 0.0
          %517 = vmatpush1.msra.mxu0 0.0
          %518 = vmatprep.subr.mxu0 0.0
          %519 = vmatpush1.msra.mxu0 0.0
          %520 = vmatprep.subr.mxu0 0.0
          %521 = vmatpush1.msra.mxu0 0.0
          %522 = vmatprep.subr.mxu0 0.0
          %523 = vmatpush1.msra.mxu0 0.0
          %524 = vmatprep.subr.mxu0 0.0
          %525 = vmatpush1.msra.mxu0 0.0
          %526 = vmatprep.mubr.f32.mxu0 0.0
          %527 = vmatmul.mubr.f32.gmra.mrb[0].mxu0 %v457
          %v528 = vpop.f32.mrb[0].mxu0
          %v529 = vadd.f32 0.0, %v528
          %v530 = vpop.f32.mrb[0].mxu0
          %531 = vmatprep.mubr.f32.mxu0 0.0
          %532 = vmatmul.mubr.f32.gmra.mrb[0].mxu0 %v460
          %v533 = vpop.f32.mrb[0].mxu0
          %v534 = vadd.f32 0.0, %v533
          %v535 = vpop.f32.mrb[0].mxu0
          %536 = vdwg.mxu0
          %v538 = vsel %vm203, %v277, 0
          %v541 = vsel %vm203, %v278, 0
          %543 = vmatprep.subr.mxu0 0.0
          %544 = vmatpush1.msra.mxu0 %v282
          %545 = vmatprep.subr.mxu0 0.0
          %546 = vmatpush1.msra.mxu0 %v283
          %547 = vmatprep.subr.mxu0 0.0
          %548 = vmatpush1.msra.mxu0 0.0
          %549 = vmatprep.subr.mxu0 0.0
          %550 = vmatpush1.msra.mxu0 0.0
          %551 = vmatprep.subr.mxu0 0.0
          %552 = vmatpush1.msra.mxu0 0.0
          %553 = vmatprep.subr.mxu0 0.0
          %554 = vmatpush1.msra.mxu0 0.0
          %555 = vmatprep.subr.mxu0 0.0
          %556 = vmatpush1.msra.mxu0 0.0
          %557 = vmatprep.subr.mxu0 0.0
          %558 = vmatpush1.msra.mxu0 0.0
          %559 = vmatprep.subr.mxu0 0.0
          %560 = vmatpush1.msra.mxu0 0.0
          %561 = vmatprep.subr.mxu0 0.0
          %562 = vmatpush1.msra.mxu0 0.0
          %563 = vmatprep.subr.mxu0 0.0
          %564 = vmatpush1.msra.mxu0 0.0
          %565 = vmatprep.subr.mxu0 0.0
          %566 = vmatpush1.msra.mxu0 0.0
          %567 = vmatprep.subr.mxu0 0.0
          %568 = vmatpush1.msra.mxu0 0.0
          %569 = vmatprep.subr.mxu0 0.0
          %570 = vmatpush1.msra.mxu0 0.0
          %571 = vmatprep.subr.mxu0 0.0
          %572 = vmatpush1.msra.mxu0 0.0
          %573 = vmatprep.subr.mxu0 0.0
          %574 = vmatpush1.msra.mxu0 0.0
          %575 = vmatprep.subr.mxu0 0.0
          %576 = vmatpush1.msra.mxu0 0.0
          %577 = vmatprep.subr.mxu0 0.0
          %578 = vmatpush1.msra.mxu0 0.0
          %579 = vmatprep.subr.mxu0 0.0
          %580 = vmatpush1.msra.mxu0 0.0
          %581 = vmatprep.subr.mxu0 0.0
          %582 = vmatpush1.msra.mxu0 0.0
          %583 = vmatprep.subr.mxu0 0.0
          %584 = vmatpush1.msra.mxu0 0.0
          %585 = vmatprep.subr.mxu0 0.0
          %586 = vmatpush1.msra.mxu0 0.0
          %587 = vmatprep.subr.mxu0 0.0
          %588 = vmatpush1.msra.mxu0 0.0
          %589 = vmatprep.subr.mxu0 0.0
          %590 = vmatpush1.msra.mxu0 0.0
          %591 = vmatprep.subr.mxu0 0.0
          %592 = vmatpush1.msra.mxu0 0.0
          %593 = vmatprep.subr.mxu0 0.0
          %594 = vmatpush1.msra.mxu0 0.0
          %595 = vmatprep.subr.mxu0 0.0
          %596 = vmatpush1.msra.mxu0 0.0
          %597 = vmatprep.subr.mxu0 0.0
          %598 = vmatpush1.msra.mxu0 0.0
          %599 = vmatprep.subr.mxu0 0.0
          %600 = vmatpush1.msra.mxu0 0.0
          %601 = vmatprep.subr.mxu0 0.0
          %602 = vmatpush1.msra.mxu0 0.0
          %603 = vmatprep.subr.mxu0 0.0
          %604 = vmatpush1.msra.mxu0 0.0
          %605 = vmatprep.subr.mxu0 0.0
          %606 = vmatpush1.msra.mxu0 0.0
          %607 = vmatprep.mubr.f32.mxu0 0.0
          %608 = vmatmul.mubr.f32.gmra.mrb[0].mxu0 %v538
          %v609 = vpop.f32.mrb[0].mxu0
          %v610 = vadd.f32 %v529, %v609
          %v611 = vpop.f32.mrb[0].mxu0
          %612 = vmatprep.mubr.f32.mxu0 0.0
          %613 = vmatmul.mubr.f32.gmra.mrb[0].mxu0 %v541
          %v614 = vpop.f32.mrb[0].mxu0
          %v615 = vadd.f32 %v534, %v614
          %v616 = vpop.f32.mrb[0].mxu0
          %617 = vdwg.mxu0
          %v618 = vld [vmem:[#allocation4 + $0x2] sm:$0xff]
          %v619 = vld [vmem:[#allocation4 + $0xa] sm:$0xff]
          %v620 = vld [vmem:[%s272 + $0x2] sm:$0xff]
          %v621 = vld [vmem:[%s272 + $0xa] sm:$0xff]
          %s622 = scalar_lea.vmem [#allocation8], 32
          %v623 = vld [vmem:[%s622] sm:$0xff]
          %v624 = vld [vmem:[%s622 + $0x8] sm:$0xff]
          %v626 = vsel %vm203, %v618, 0
          %v629 = vsel %vm203, %v619, 0
          %631 = vmatprep.subr.mxu0 0.0
          %632 = vmatpush1.msra.mxu0 %v623
          %633 = vmatprep.subr.mxu0 0.0
          %634 = vmatpush1.msra.mxu0 %v624
          %635 = vmatprep.subr.mxu0 0.0
          %636 = vmatpush1.msra.mxu0 0.0
          %637 = vmatprep.subr.mxu0 0.0
          %638 = vmatpush1.msra.mxu0 0.0
          %639 = vmatprep.subr.mxu0 0.0
          %640 = vmatpush1.msra.mxu0 0.0
          %641 = vmatprep.subr.mxu0 0.0
          %642 = vmatpush1.msra.mxu0 0.0
          %643 = vmatprep.subr.mxu0 0.0
          %644 = vmatpush1.msra.mxu0 0.0
          %645 = vmatprep.subr.mxu0 0.0
          %646 = vmatpush1.msra.mxu0 0.0
          %647 = vmatprep.subr.mxu0 0.0
          %648 = vmatpush1.msra.mxu0 0.0
          %649 = vmatprep.subr.mxu0 0.0
          %650 = vmatpush1.msra.mxu0 0.0
          %651 = vmatprep.subr.mxu0 0.0
          %652 = vmatpush1.msra.mxu0 0.0
          %653 = vmatprep.subr.mxu0 0.0
          %654 = vmatpush1.msra.mxu0 0.0
          %655 = vmatprep.subr.mxu0 0.0
          %656 = vmatpush1.msra.mxu0 0.0
          %657 = vmatprep.subr.mxu0 0.0
          %658 = vmatpush1.msra.mxu0 0.0
          %659 = vmatprep.subr.mxu0 0.0
          %660 = vmatpush1.msra.mxu0 0.0
          %661 = vmatprep.subr.mxu0 0.0
          %662 = vmatpush1.msra.mxu0 0.0
          %663 = vmatprep.subr.mxu0 0.0
          %664 = vmatpush1.msra.mxu0 0.0
          %665 = vmatprep.subr.mxu0 0.0
          %666 = vmatpush1.msra.mxu0 0.0
          %667 = vmatprep.subr.mxu0 0.0
          %668 = vmatpush1.msra.mxu0 0.0
          %669 = vmatprep.subr.mxu0 0.0
          %670 = vmatpush1.msra.mxu0 0.0
          %671 = vmatprep.subr.mxu0 0.0
          %672 = vmatpush1.msra.mxu0 0.0
          %673 = vmatprep.subr.mxu0 0.0
          %674 = vmatpush1.msra.mxu0 0.0
          %675 = vmatprep.subr.mxu0 0.0
          %676 = vmatpush1.msra.mxu0 0.0
          %677 = vmatprep.subr.mxu0 0.0
          %678 = vmatpush1.msra.mxu0 0.0
          %679 = vmatprep.subr.mxu0 0.0
          %680 = vmatpush1.msra.mxu0 0.0
          %681 = vmatprep.subr.mxu0 0.0
          %682 = vmatpush1.msra.mxu0 0.0
          %683 = vmatprep.subr.mxu0 0.0
          %684 = vmatpush1.msra.mxu0 0.0
          %685 = vmatprep.subr.mxu0 0.0
          %686 = vmatpush1.msra.mxu0 0.0
          %687 = vmatprep.subr.mxu0 0.0
          %688 = vmatpush1.msra.mxu0 0.0
          %689 = vmatprep.subr.mxu0 0.0
          %690 = vmatpush1.msra.mxu0 0.0
          %691 = vmatprep.subr.mxu0 0.0
          %692 = vmatpush1.msra.mxu0 0.0
          %693 = vmatprep.subr.mxu0 0.0
          %694 = vmatpush1.msra.mxu0 0.0
          %695 = vmatprep.mubr.f32.mxu0 0.0
          %696 = vmatmul.mubr.f32.gmra.mrb[0].mxu0 %v626
          %v697 = vpop.f32.mrb[0].mxu0
          %v698 = vadd.f32 0.0, %v697
          %v699 = vpop.f32.mrb[0].mxu0
          %700 = vmatprep.mubr.f32.mxu0 0.0
          %701 = vmatmul.mubr.f32.gmra.mrb[0].mxu0 %v629
          %v702 = vpop.f32.mrb[0].mxu0
          %v703 = vadd.f32 0.0, %v702
          %v704 = vpop.f32.mrb[0].mxu0
          %705 = vdwg.mxu0
          %v706 = vadd.f32 %v445, %v698
          %v707 = vadd.f32 %v450, %v703
          %s708 = scalar_lea.vmem [#allocation8], 144
          %v709 = vld [vmem:[%s708] sm:$0xff]
          %v710 = vld [vmem:[%s708 + $0x8] sm:$0xff]
          %v712 = vsel %vm203, %v620, 0
          %v715 = vsel %vm203, %v621, 0
          %717 = vmatprep.subr.mxu0 0.0
          %718 = vmatpush1.msra.mxu0 %v709
          %719 = vmatprep.subr.mxu0 0.0
          %720 = vmatpush1.msra.mxu0 %v710
          %721 = vmatprep.subr.mxu0 0.0
          %722 = vmatpush1.msra.mxu0 0.0
          %723 = vmatprep.subr.mxu0 0.0
          %724 = vmatpush1.msra.mxu0 0.0
          %725 = vmatprep.subr.mxu0 0.0
          %726 = vmatpush1.msra.mxu0 0.0
          %727 = vmatprep.subr.mxu0 0.0
          %728 = vmatpush1.msra.mxu0 0.0
          %729 = vmatprep.subr.mxu0 0.0
          %730 = vmatpush1.msra.mxu0 0.0
          %731 = vmatprep.subr.mxu0 0.0
          %732 = vmatpush1.msra.mxu0 0.0
          %733 = vmatprep.subr.mxu0 0.0
          %734 = vmatpush1.msra.mxu0 0.0
          %735 = vmatprep.subr.mxu0 0.0
          %736 = vmatpush1.msra.mxu0 0.0
          %737 = vmatprep.subr.mxu0 0.0
          %738 = vmatpush1.msra.mxu0 0.0
          %739 = vmatprep.subr.mxu0 0.0
          %740 = vmatpush1.msra.mxu0 0.0
          %741 = vmatprep.subr.mxu0 0.0
          %742 = vmatpush1.msra.mxu0 0.0
          %743 = vmatprep.subr.mxu0 0.0
          %744 = vmatpush1.msra.mxu0 0.0
          %745 = vmatprep.subr.mxu0 0.0
          %746 = vmatpush1.msra.mxu0 0.0
          %747 = vmatprep.subr.mxu0 0.0
          %748 = vmatpush1.msra.mxu0 0.0
          %749 = vmatprep.subr.mxu0 0.0
          %750 = vmatpush1.msra.mxu0 0.0
          %751 = vmatprep.subr.mxu0 0.0
          %752 = vmatpush1.msra.mxu0 0.0
          %753 = vmatprep.subr.mxu0 0.0
          %754 = vmatpush1.msra.mxu0 0.0
          %755 = vmatprep.subr.mxu0 0.0
          %756 = vmatpush1.msra.mxu0 0.0
          %757 = vmatprep.subr.mxu0 0.0
          %758 = vmatpush1.msra.mxu0 0.0
          %759 = vmatprep.subr.mxu0 0.0
          %760 = vmatpush1.msra.mxu0 0.0
          %761 = vmatprep.subr.mxu0 0.0
          %762 = vmatpush1.msra.mxu0 0.0
          %763 = vmatprep.subr.mxu0 0.0
          %764 = vmatpush1.msra.mxu0 0.0
          %765 = vmatprep.subr.mxu0 0.0
          %766 = vmatpush1.msra.mxu0 0.0
          %767 = vmatprep.subr.mxu0 0.0
          %768 = vmatpush1.msra.mxu0 0.0
          %769 = vmatprep.subr.mxu0 0.0
          %770 = vmatpush1.msra.mxu0 0.0
          %771 = vmatprep.subr.mxu0 0.0
          %772 = vmatpush1.msra.mxu0 0.0
          %773 = vmatprep.subr.mxu0 0.0
          %774 = vmatpush1.msra.mxu0 0.0
          %775 = vmatprep.subr.mxu0 0.0
          %776 = vmatpush1.msra.mxu0 0.0
          %777 = vmatprep.subr.mxu0 0.0
          %778 = vmatpush1.msra.mxu0 0.0
          %779 = vmatprep.subr.mxu0 0.0
          %780 = vmatpush1.msra.mxu0 0.0
          %781 = vmatprep.mubr.f32.mxu0 0.0
          %782 = vmatmul.mubr.f32.gmra.mrb[0].mxu0 %v712
          %v783 = vpop.f32.mrb[0].mxu0
          %v784 = vadd.f32 0.0, %v783
          %v785 = vpop.f32.mrb[0].mxu0
          %786 = vmatprep.mubr.f32.mxu0 0.0
          %787 = vmatmul.mubr.f32.gmra.mrb[0].mxu0 %v715
          %v788 = vpop.f32.mrb[0].mxu0
          %v789 = vadd.f32 0.0, %v788
          %v790 = vpop.f32.mrb[0].mxu0
          %791 = vdwg.mxu0
          %v792 = vadd.f32 %v610, %v784
          %v793 = vadd.f32 %v615, %v789
          %v794 = vld [vmem:[#allocation4 + $0x3] sm:$0xff]
          %v795 = vld [vmem:[#allocation4 + $0xb] sm:$0xff]
          %v796 = vld [vmem:[%s272 + $0x3] sm:$0xff]
          %v797 = vld [vmem:[%s272 + $0xb] sm:$0xff]
          %s798 = scalar_lea.vmem [#allocation8], 48
          %v799 = vld [vmem:[%s798] sm:$0xff]
          %v800 = vld [vmem:[%s798 + $0x8] sm:$0xff]
          %v802 = vsel %vm203, %v794, 0
          %v805 = vsel %vm203, %v795, 0
          %807 = vmatprep.subr.mxu0 0.0
          %808 = vmatpush1.msra.mxu0 %v799
          %809 = vmatprep.subr.mxu0 0.0
          %810 = vmatpush1.msra.mxu0 %v800
          %811 = vmatprep.subr.mxu0 0.0
          %812 = vmatpush1.msra.mxu0 0.0
          %813 = vmatprep.subr.mxu0 0.0
          %814 = vmatpush1.msra.mxu0 0.0
          %815 = vmatprep.subr.mxu0 0.0
          %816 = vmatpush1.msra.mxu0 0.0
          %817 = vmatprep.subr.mxu0 0.0
          %818 = vmatpush1.msra.mxu0 0.0
          %819 = vmatprep.subr.mxu0 0.0
          %820 = vmatpush1.msra.mxu0 0.0
          %821 = vmatprep.subr.mxu0 0.0
          %822 = vmatpush1.msra.mxu0 0.0
          %823 = vmatprep.subr.mxu0 0.0
          %824 = vmatpush1.msra.mxu0 0.0
          %825 = vmatprep.subr.mxu0 0.0
          %826 = vmatpush1.msra.mxu0 0.0
          %827 = vmatprep.subr.mxu0 0.0
          %828 = vmatpush1.msra.mxu0 0.0
          %829 = vmatprep.subr.mxu0 0.0
          %830 = vmatpush1.msra.mxu0 0.0
          %831 = vmatprep.subr.mxu0 0.0
          %832 = vmatpush1.msra.mxu0 0.0
          %833 = vmatprep.subr.mxu0 0.0
          %834 = vmatpush1.msra.mxu0 0.0
          %835 = vmatprep.subr.mxu0 0.0
          %836 = vmatpush1.msra.mxu0 0.0
          %837 = vmatprep.subr.mxu0 0.0
          %838 = vmatpush1.msra.mxu0 0.0
          %839 = vmatprep.subr.mxu0 0.0
          %840 = vmatpush1.msra.mxu0 0.0
          %841 = vmatprep.subr.mxu0 0.0
          %842 = vmatpush1.msra.mxu0 0.0
          %843 = vmatprep.subr.mxu0 0.0
          %844 = vmatpush1.msra.mxu0 0.0
          %845 = vmatprep.subr.mxu0 0.0
          %846 = vmatpush1.msra.mxu0 0.0
          %847 = vmatprep.subr.mxu0 0.0
          %848 = vmatpush1.msra.mxu0 0.0
          %849 = vmatprep.subr.mxu0 0.0
          %850 = vmatpush1.msra.mxu0 0.0
          %851 = vmatprep.subr.mxu0 0.0
          %852 = vmatpush1.msra.mxu0 0.0
          %853 = vmatprep.subr.mxu0 0.0
          %854 = vmatpush1.msra.mxu0 0.0
          %855 = vmatprep.subr.mxu0 0.0
          %856 = vmatpush1.msra.mxu0 0.0
          %857 = vmatprep.subr.mxu0 0.0
          %858 = vmatpush1.msra.mxu0 0.0
          %859 = vmatprep.subr.mxu0 0.0
          %860 = vmatpush1.msra.mxu0 0.0
          %861 = vmatprep.subr.mxu0 0.0
          %862 = vmatpush1.msra.mxu0 0.0
          %863 = vmatprep.subr.mxu0 0.0
          %864 = vmatpush1.msra.mxu0 0.0
          %865 = vmatprep.subr.mxu0 0.0
          %866 = vmatpush1.msra.mxu0 0.0
          %867 = vmatprep.subr.mxu0 0.0
          %868 = vmatpush1.msra.mxu0 0.0
          %869 = vmatprep.subr.mxu0 0.0
          %870 = vmatpush1.msra.mxu0 0.0
          %871 = vmatprep.mubr.f32.mxu0 0.0
          %872 = vmatmul.mubr.f32.gmra.mrb[0].mxu0 %v802
          %v873 = vpop.f32.mrb[0].mxu0
          %v874 = vadd.f32 0.0, %v873
          %v875 = vpop.f32.mrb[0].mxu0
          %876 = vmatprep.mubr.f32.mxu0 0.0
          %877 = vmatmul.mubr.f32.gmra.mrb[0].mxu0 %v805
          %v878 = vpop.f32.mrb[0].mxu0
          %v879 = vadd.f32 0.0, %v878
          %v880 = vpop.f32.mrb[0].mxu0
          %881 = vdwg.mxu0
          %v882 = vadd.f32 %v706, %v874
          %v883 = vadd.f32 %v707, %v879
          %s884 = scalar_lea.vmem [#allocation8], 160
          %v885 = vld [vmem:[%s884] sm:$0xff]
          %v886 = vld [vmem:[%s884 + $0x8] sm:$0xff]
          %v888 = vsel %vm203, %v796, 0
          %v891 = vsel %vm203, %v797, 0
          %893 = vmatprep.subr.mxu0 0.0
          %894 = vmatpush1.msra.mxu0 %v885
          %895 = vmatprep.subr.mxu0 0.0
          %896 = vmatpush1.msra.mxu0 %v886
          %897 = vmatprep.subr.mxu0 0.0
          %898 = vmatpush1.msra.mxu0 0.0
          %899 = vmatprep.subr.mxu0 0.0
          %900 = vmatpush1.msra.mxu0 0.0
          %901 = vmatprep.subr.mxu0 0.0
          %902 = vmatpush1.msra.mxu0 0.0
          %903 = vmatprep.subr.mxu0 0.0
          %904 = vmatpush1.msra.mxu0 0.0
          %905 = vmatprep.subr.mxu0 0.0
          %906 = vmatpush1.msra.mxu0 0.0
          %907 = vmatprep.subr.mxu0 0.0
          %908 = vmatpush1.msra.mxu0 0.0
          %909 = vmatprep.subr.mxu0 0.0
          %910 = vmatpush1.msra.mxu0 0.0
          %911 = vmatprep.subr.mxu0 0.0
          %912 = vmatpush1.msra.mxu0 0.0
          %913 = vmatprep.subr.mxu0 0.0
          %914 = vmatpush1.msra.mxu0 0.0
          %915 = vmatprep.subr.mxu0 0.0
          %916 = vmatpush1.msra.mxu0 0.0
          %917 = vmatprep.subr.mxu0 0.0
          %918 = vmatpush1.msra.mxu0 0.0
          %919 = vmatprep.subr.mxu0 0.0
          %920 = vmatpush1.msra.mxu0 0.0
          %921 = vmatprep.subr.mxu0 0.0
          %922 = vmatpush1.msra.mxu0 0.0
          %923 = vmatprep.subr.mxu0 0.0
          %924 = vmatpush1.msra.mxu0 0.0
          %925 = vmatprep.subr.mxu0 0.0
          %926 = vmatpush1.msra.mxu0 0.0
          %927 = vmatprep.subr.mxu0 0.0
          %928 = vmatpush1.msra.mxu0 0.0
          %929 = vmatprep.subr.mxu0 0.0
          %930 = vmatpush1.msra.mxu0 0.0
          %931 = vmatprep.subr.mxu0 0.0
          %932 = vmatpush1.msra.mxu0 0.0
          %933 = vmatprep.subr.mxu0 0.0
          %934 = vmatpush1.msra.mxu0 0.0
          %935 = vmatprep.subr.mxu0 0.0
          %936 = vmatpush1.msra.mxu0 0.0
          %937 = vmatprep.subr.mxu0 0.0
          %938 = vmatpush1.msra.mxu0 0.0
          %939 = vmatprep.subr.mxu0 0.0
          %940 = vmatpush1.msra.mxu0 0.0
          %941 = vmatprep.subr.mxu0 0.0
          %942 = vmatpush1.msra.mxu0 0.0
          %943 = vmatprep.subr.mxu0 0.0
          %944 = vmatpush1.msra.mxu0 0.0
          %945 = vmatprep.subr.mxu0 0.0
          %946 = vmatpush1.msra.mxu0 0.0
          %947 = vmatprep.subr.mxu0 0.0
          %948 = vmatpush1.msra.mxu0 0.0
          %949 = vmatprep.subr.mxu0 0.0
          %950 = vmatpush1.msra.mxu0 0.0
          %951 = vmatprep.subr.mxu0 0.0
          %952 = vmatpush1.msra.mxu0 0.0
          %953 = vmatprep.subr.mxu0 0.0
          %954 = vmatpush1.msra.mxu0 0.0
          %955 = vmatprep.subr.mxu0 0.0
          %956 = vmatpush1.msra.mxu0 0.0
          %957 = vmatprep.mubr.f32.mxu0 0.0
          %958 = vmatmul.mubr.f32.gmra.mrb[0].mxu0 %v888
          %v959 = vpop.f32.mrb[0].mxu0
          %v960 = vadd.f32 0.0, %v959
          %v961 = vpop.f32.mrb[0].mxu0
          %962 = vmatprep.mubr.f32.mxu0 0.0
          %963 = vmatmul.mubr.f32.gmra.mrb[0].mxu0 %v891
          %v964 = vpop.f32.mrb[0].mxu0
          %v965 = vadd.f32 0.0, %v964
          %v966 = vpop.f32.mrb[0].mxu0
          %967 = vdwg.mxu0
          %v968 = vadd.f32 %v792, %v960
          %v969 = vadd.f32 %v793, %v965
          %v970 = vld [vmem:[#allocation4 + $0x4] sm:$0xff]
          %v971 = vld [vmem:[#allocation4 + $0xc] sm:$0xff]
          %v972 = vld [vmem:[%s272 + $0x4] sm:$0xff]
          %v973 = vld [vmem:[%s272 + $0xc] sm:$0xff]
          %s974 = scalar_lea.vmem [#allocation8], 64
          %v975 = vld [vmem:[%s974] sm:$0xff]
          %v976 = vld [vmem:[%s974 + $0x8] sm:$0xff]
          %v978 = vsel %vm203, %v970, 0
          %v981 = vsel %vm203, %v971, 0
          %983 = vmatprep.subr.mxu0 0.0
          %984 = vmatpush1.msra.mxu0 %v975
          %985 = vmatprep.subr.mxu0 0.0
          %986 = vmatpush1.msra.mxu0 %v976
          %987 = vmatprep.subr.mxu0 0.0
          %988 = vmatpush1.msra.mxu0 0.0
          %989 = vmatprep.subr.mxu0 0.0
          %990 = vmatpush1.msra.mxu0 0.0
          %991 = vmatprep.subr.mxu0 0.0
          %992 = vmatpush1.msra.mxu0 0.0
          %993 = vmatprep.subr.mxu0 0.0
          %994 = vmatpush1.msra.mxu0 0.0
          %995 = vmatprep.subr.mxu0 0.0
          %996 = vmatpush1.msra.mxu0 0.0
          %997 = vmatprep.subr.mxu0 0.0
          %998 = vmatpush1.msra.mxu0 0.0
          %999 = vmatprep.subr.mxu0 0.0
          %1000 = vmatpush1.msra.mxu0 0.0
          %1001 = vmatprep.subr.mxu0 0.0
          %1002 = vmatpush1.msra.mxu0 0.0
          %1003 = vmatprep.subr.mxu0 0.0
          %1004 = vmatpush1.msra.mxu0 0.0
          %1005 = vmatprep.subr.mxu0 0.0
          %1006 = vmatpush1.msra.mxu0 0.0
          %1007 = vmatprep.subr.mxu0 0.0
          %1008 = vmatpush1.msra.mxu0 0.0
          %1009 = vmatprep.subr.mxu0 0.0
          %1010 = vmatpush1.msra.mxu0 0.0
          %1011 = vmatprep.subr.mxu0 0.0
          %1012 = vmatpush1.msra.mxu0 0.0
          %1013 = vmatprep.subr.mxu0 0.0
          %1014 = vmatpush1.msra.mxu0 0.0
          %1015 = vmatprep.subr.mxu0 0.0
          %1016 = vmatpush1.msra.mxu0 0.0
          %1017 = vmatprep.subr.mxu0 0.0
          %1018 = vmatpush1.msra.mxu0 0.0
          %1019 = vmatprep.subr.mxu0 0.0
          %1020 = vmatpush1.msra.mxu0 0.0
          %1021 = vmatprep.subr.mxu0 0.0
          %1022 = vmatpush1.msra.mxu0 0.0
          %1023 = vmatprep.subr.mxu0 0.0
          %1024 = vmatpush1.msra.mxu0 0.0
          %1025 = vmatprep.subr.mxu0 0.0
          %1026 = vmatpush1.msra.mxu0 0.0
          %1027 = vmatprep.subr.mxu0 0.0
          %1028 = vmatpush1.msra.mxu0 0.0
          %1029 = vmatprep.subr.mxu0 0.0
          %1030 = vmatpush1.msra.mxu0 0.0
          %1031 = vmatprep.subr.mxu0 0.0
          %1032 = vmatpush1.msra.mxu0 0.0
          %1033 = vmatprep.subr.mxu0 0.0
          %1034 = vmatpush1.msra.mxu0 0.0
          %1035 = vmatprep.subr.mxu0 0.0
          %1036 = vmatpush1.msra.mxu0 0.0
          %1037 = vmatprep.subr.mxu0 0.0
          %1038 = vmatpush1.msra.mxu0 0.0
          %1039 = vmatprep.subr.mxu0 0.0
          %1040 = vmatpush1.msra.mxu0 0.0
          %1041 = vmatprep.subr.mxu0 0.0
          %1042 = vmatpush1.msra.mxu0 0.0
          %1043 = vmatprep.subr.mxu0 0.0
          %1044 = vmatpush1.msra.mxu0 0.0
          %1045 = vmatprep.subr.mxu0 0.0
          %1046 = vmatpush1.msra.mxu0 0.0
          %1047 = vmatprep.mubr.f32.mxu0 0.0
          %1048 = vmatmul.mubr.f32.gmra.mrb[0].mxu0 %v978
          %v1049 = vpop.f32.mrb[0].mxu0
          %v1050 = vadd.f32 0.0, %v1049
          %v1051 = vpop.f32.mrb[0].mxu0
          %1052 = vmatprep.mubr.f32.mxu0 0.0
          %1053 = vmatmul.mubr.f32.gmra.mrb[0].mxu0 %v981
          %v1054 = vpop.f32.mrb[0].mxu0
          %v1055 = vadd.f32 0.0, %v1054
          %v1056 = vpop.f32.mrb[0].mxu0
          %1057 = vdwg.mxu0
          %v1058 = vadd.f32 %v882, %v1050
          %v1059 = vadd.f32 %v883, %v1055
          %s1060 = scalar_lea.vmem [#allocation8], 176
          %v1061 = vld [vmem:[%s1060] sm:$0xff]
          %v1062 = vld [vmem:[%s1060 + $0x8] sm:$0xff]
          %v1064 = vsel %vm203, %v972, 0
          %v1067 = vsel %vm203, %v973, 0
          %1069 = vmatprep.subr.mxu0 0.0
          %1070 = vmatpush1.msra.mxu0 %v1061
          %1071 = vmatprep.subr.mxu0 0.0
          %1072 = vmatpush1.msra.mxu0 %v1062
          %1073 = vmatprep.subr.mxu0 0.0
          %1074 = vmatpush1.msra.mxu0 0.0
          %1075 = vmatprep.subr.mxu0 0.0
          %1076 = vmatpush1.msra.mxu0 0.0
          %1077 = vmatprep.subr.mxu0 0.0
          %1078 = vmatpush1.msra.mxu0 0.0
          %1079 = vmatprep.subr.mxu0 0.0
          %1080 = vmatpush1.msra.mxu0 0.0
          %1081 = vmatprep.subr.mxu0 0.0
          %1082 = vmatpush1.msra.mxu0 0.0
          %1083 = vmatprep.subr.mxu0 0.0
          %1084 = vmatpush1.msra.mxu0 0.0
          %1085 = vmatprep.subr.mxu0 0.0
          %1086 = vmatpush1.msra.mxu0 0.0
          %1087 = vmatprep.subr.mxu0 0.0
          %1088 = vmatpush1.msra.mxu0 0.0
          %1089 = vmatprep.subr.mxu0 0.0
          %1090 = vmatpush1.msra.mxu0 0.0
          %1091 = vmatprep.subr.mxu0 0.0
          %1092 = vmatpush1.msra.mxu0 0.0
          %1093 = vmatprep.subr.mxu0 0.0
          %1094 = vmatpush1.msra.mxu0 0.0
          %1095 = vmatprep.subr.mxu0 0.0
          %1096 = vmatpush1.msra.mxu0 0.0
          %1097 = vmatprep.subr.mxu0 0.0
          %1098 = vmatpush1.msra.mxu0 0.0
          %1099 = vmatprep.subr.mxu0 0.0
          %1100 = vmatpush1.msra.mxu0 0.0
          %1101 = vmatprep.subr.mxu0 0.0
          %1102 = vmatpush1.msra.mxu0 0.0
          %1103 = vmatprep.subr.mxu0 0.0
          %1104 = vmatpush1.msra.mxu0 0.0
          %1105 = vmatprep.subr.mxu0 0.0
          %1106 = vmatpush1.msra.mxu0 0.0
          %1107 = vmatprep.subr.mxu0 0.0
          %1108 = vmatpush1.msra.mxu0 0.0
          %1109 = vmatprep.subr.mxu0 0.0
          %1110 = vmatpush1.msra.mxu0 0.0
          %1111 = vmatprep.subr.mxu0 0.0
          %1112 = vmatpush1.msra.mxu0 0.0
          %1113 = vmatprep.subr.mxu0 0.0
          %1114 = vmatpush1.msra.mxu0 0.0
          %1115 = vmatprep.subr.mxu0 0.0
          %1116 = vmatpush1.msra.mxu0 0.0
          %1117 = vmatprep.subr.mxu0 0.0
          %1118 = vmatpush1.msra.mxu0 0.0
          %1119 = vmatprep.subr.mxu0 0.0
          %1120 = vmatpush1.msra.mxu0 0.0
          %1121 = vmatprep.subr.mxu0 0.0
          %1122 = vmatpush1.msra.mxu0 0.0
          %1123 = vmatprep.subr.mxu0 0.0
          %1124 = vmatpush1.msra.mxu0 0.0
          %1125 = vmatprep.subr.mxu0 0.0
          %1126 = vmatpush1.msra.mxu0 0.0
          %1127 = vmatprep.subr.mxu0 0.0
          %1128 = vmatpush1.msra.mxu0 0.0
          %1129 = vmatprep.subr.mxu0 0.0
          %1130 = vmatpush1.msra.mxu0 0.0
          %1131 = vmatprep.subr.mxu0 0.0
          %1132 = vmatpush1.msra.mxu0 0.0
          %1133 = vmatprep.mubr.f32.mxu0 0.0
          %1134 = vmatmul.mubr.f32.gmra.mrb[0].mxu0 %v1064
          %v1135 = vpop.f32.mrb[0].mxu0
          %v1136 = vadd.f32 0.0, %v1135
          %v1137 = vpop.f32.mrb[0].mxu0
          %1138 = vmatprep.mubr.f32.mxu0 0.0
          %1139 = vmatmul.mubr.f32.gmra.mrb[0].mxu0 %v1067
          %v1140 = vpop.f32.mrb[0].mxu0
          %v1141 = vadd.f32 0.0, %v1140
          %v1142 = vpop.f32.mrb[0].mxu0
          %1143 = vdwg.mxu0
          %v1144 = vadd.f32 %v968, %v1136
          %v1145 = vadd.f32 %v969, %v1141
          %v1146 = vld [vmem:[#allocation4 + $0x5] sm:$0xff]
          %v1147 = vld [vmem:[#allocation4 + $0xd] sm:$0xff]
          %v1148 = vld [vmem:[%s272 + $0x5] sm:$0xff]
          %v1149 = vld [vmem:[%s272 + $0xd] sm:$0xff]
          %s1150 = scalar_lea.vmem [#allocation8], 80
          %v1151 = vld [vmem:[%s1150] sm:$0xff]
          %v1152 = vld [vmem:[%s1150 + $0x8] sm:$0xff]
          %v1154 = vsel %vm203, %v1146, 0
          %v1157 = vsel %vm203, %v1147, 0
          %1159 = vmatprep.subr.mxu0 0.0
          %1160 = vmatpush1.msra.mxu0 %v1151
          %1161 = vmatprep.subr.mxu0 0.0
          %1162 = vmatpush1.msra.mxu0 %v1152
          %1163 = vmatprep.subr.mxu0 0.0
          %1164 = vmatpush1.msra.mxu0 0.0
          %1165 = vmatprep.subr.mxu0 0.0
          %1166 = vmatpush1.msra.mxu0 0.0
          %1167 = vmatprep.subr.mxu0 0.0
          %1168 = vmatpush1.msra.mxu0 0.0
          %1169 = vmatprep.subr.mxu0 0.0
          %1170 = vmatpush1.msra.mxu0 0.0
          %1171 = vmatprep.subr.mxu0 0.0
          %1172 = vmatpush1.msra.mxu0 0.0
          %1173 = vmatprep.subr.mxu0 0.0
          %1174 = vmatpush1.msra.mxu0 0.0
          %1175 = vmatprep.subr.mxu0 0.0
          %1176 = vmatpush1.msra.mxu0 0.0
          %1177 = vmatprep.subr.mxu0 0.0
          %1178 = vmatpush1.msra.mxu0 0.0
          %1179 = vmatprep.subr.mxu0 0.0
          %1180 = vmatpush1.msra.mxu0 0.0
          %1181 = vmatprep.subr.mxu0 0.0
          %1182 = vmatpush1.msra.mxu0 0.0
          %1183 = vmatprep.subr.mxu0 0.0
          %1184 = vmatpush1.msra.mxu0 0.0
          %1185 = vmatprep.subr.mxu0 0.0
          %1186 = vmatpush1.msra.mxu0 0.0
          %1187 = vmatprep.subr.mxu0 0.0
          %1188 = vmatpush1.msra.mxu0 0.0
          %1189 = vmatprep.subr.mxu0 0.0
          %1190 = vmatpush1.msra.mxu0 0.0
          %1191 = vmatprep.subr.mxu0 0.0
          %1192 = vmatpush1.msra.mxu0 0.0
          %1193 = vmatprep.subr.mxu0 0.0
          %1194 = vmatpush1.msra.mxu0 0.0
          %1195 = vmatprep.subr.mxu0 0.0
          %1196 = vmatpush1.msra.mxu0 0.0
          %1197 = vmatprep.subr.mxu0 0.0
          %1198 = vmatpush1.msra.mxu0 0.0
          %1199 = vmatprep.subr.mxu0 0.0
          %1200 = vmatpush1.msra.mxu0 0.0
          %1201 = vmatprep.subr.mxu0 0.0
          %1202 = vmatpush1.msra.mxu0 0.0
          %1203 = vmatprep.subr.mxu0 0.0
          %1204 = vmatpush1.msra.mxu0 0.0
          %1205 = vmatprep.subr.mxu0 0.0
          %1206 = vmatpush1.msra.mxu0 0.0
          %1207 = vmatprep.subr.mxu0 0.0
          %1208 = vmatpush1.msra.mxu0 0.0
          %1209 = vmatprep.subr.mxu0 0.0
          %1210 = vmatpush1.msra.mxu0 0.0
          %1211 = vmatprep.subr.mxu0 0.0
          %1212 = vmatpush1.msra.mxu0 0.0
          %1213 = vmatprep.subr.mxu0 0.0
          %1214 = vmatpush1.msra.mxu0 0.0
          %1215 = vmatprep.subr.mxu0 0.0
          %1216 = vmatpush1.msra.mxu0 0.0
          %1217 = vmatprep.subr.mxu0 0.0
          %1218 = vmatpush1.msra.mxu0 0.0
          %1219 = vmatprep.subr.mxu0 0.0
          %1220 = vmatpush1.msra.mxu0 0.0
          %1221 = vmatprep.subr.mxu0 0.0
          %1222 = vmatpush1.msra.mxu0 0.0
          %1223 = vmatprep.mubr.f32.mxu0 0.0
          %1224 = vmatmul.mubr.f32.gmra.mrb[0].mxu0 %v1154
          %v1225 = vpop.f32.mrb[0].mxu0
          %v1226 = vadd.f32 0.0, %v1225
          %v1227 = vpop.f32.mrb[0].mxu0
          %1228 = vmatprep.mubr.f32.mxu0 0.0
          %1229 = vmatmul.mubr.f32.gmra.mrb[0].mxu0 %v1157
          %v1230 = vpop.f32.mrb[0].mxu0
          %v1231 = vadd.f32 0.0, %v1230
          %v1232 = vpop.f32.mrb[0].mxu0
          %1233 = vdwg.mxu0
          %v1234 = vadd.f32 %v1058, %v1226
          %v1235 = vadd.f32 %v1059, %v1231
          %s1236 = scalar_lea.vmem [#allocation8], 192
          %v1237 = vld [vmem:[%s1236] sm:$0xff]
          %v1238 = vld [vmem:[%s1236 + $0x8] sm:$0xff]
          %v1240 = vsel %vm203, %v1148, 0
          %v1243 = vsel %vm203, %v1149, 0
          %1245 = vmatprep.subr.mxu0 0.0
          %1246 = vmatpush1.msra.mxu0 %v1237
          %1247 = vmatprep.subr.mxu0 0.0
          %1248 = vmatpush1.msra.mxu0 %v1238
          %1249 = vmatprep.subr.mxu0 0.0
          %1250 = vmatpush1.msra.mxu0 0.0
          %1251 = vmatprep.subr.mxu0 0.0
          %1252 = vmatpush1.msra.mxu0 0.0
          %1253 = vmatprep.subr.mxu0 0.0
          %1254 = vmatpush1.msra.mxu0 0.0
          %1255 = vmatprep.subr.mxu0 0.0
          %1256 = vmatpush1.msra.mxu0 0.0
          %1257 = vmatprep.subr.mxu0 0.0
          %1258 = vmatpush1.msra.mxu0 0.0
          %1259 = vmatprep.subr.mxu0 0.0
          %1260 = vmatpush1.msra.mxu0 0.0
          %1261 = vmatprep.subr.mxu0 0.0
          %1262 = vmatpush1.msra.mxu0 0.0
          %1263 = vmatprep.subr.mxu0 0.0
          %1264 = vmatpush1.msra.mxu0 0.0
          %1265 = vmatprep.subr.mxu0 0.0
          %1266 = vmatpush1.msra.mxu0 0.0
          %1267 = vmatprep.subr.mxu0 0.0
          %1268 = vmatpush1.msra.mxu0 0.0
          %1269 = vmatprep.subr.mxu0 0.0
          %1270 = vmatpush1.msra.mxu0 0.0
          %1271 = vmatprep.subr.mxu0 0.0
          %1272 = vmatpush1.msra.mxu0 0.0
          %1273 = vmatprep.subr.mxu0 0.0
          %1274 = vmatpush1.msra.mxu0 0.0
          %1275 = vmatprep.subr.mxu0 0.0
          %1276 = vmatpush1.msra.mxu0 0.0
          %1277 = vmatprep.subr.mxu0 0.0
          %1278 = vmatpush1.msra.mxu0 0.0
          %1279 = vmatprep.subr.mxu0 0.0
          %1280 = vmatpush1.msra.mxu0 0.0
          %1281 = vmatprep.subr.mxu0 0.0
          %1282 = vmatpush1.msra.mxu0 0.0
          %1283 = vmatprep.subr.mxu0 0.0
          %1284 = vmatpush1.msra.mxu0 0.0
          %1285 = vmatprep.subr.mxu0 0.0
          %1286 = vmatpush1.msra.mxu0 0.0
          %1287 = vmatprep.subr.mxu0 0.0
          %1288 = vmatpush1.msra.mxu0 0.0
          %1289 = vmatprep.subr.mxu0 0.0
          %1290 = vmatpush1.msra.mxu0 0.0
          %1291 = vmatprep.subr.mxu0 0.0
          %1292 = vmatpush1.msra.mxu0 0.0
          %1293 = vmatprep.subr.mxu0 0.0
          %1294 = vmatpush1.msra.mxu0 0.0
          %1295 = vmatprep.subr.mxu0 0.0
          %1296 = vmatpush1.msra.mxu0 0.0
          %1297 = vmatprep.subr.mxu0 0.0
          %1298 = vmatpush1.msra.mxu0 0.0
          %1299 = vmatprep.subr.mxu0 0.0
          %1300 = vmatpush1.msra.mxu0 0.0
          %1301 = vmatprep.subr.mxu0 0.0
          %1302 = vmatpush1.msra.mxu0 0.0
          %1303 = vmatprep.subr.mxu0 0.0
          %1304 = vmatpush1.msra.mxu0 0.0
          %1305 = vmatprep.subr.mxu0 0.0
          %1306 = vmatpush1.msra.mxu0 0.0
          %1307 = vmatprep.subr.mxu0 0.0
          %1308 = vmatpush1.msra.mxu0 0.0
          %1309 = vmatprep.mubr.f32.mxu0 0.0
          %1310 = vmatmul.mubr.f32.gmra.mrb[0].mxu0 %v1240
          %v1311 = vpop.f32.mrb[0].mxu0
          %v1312 = vadd.f32 0.0, %v1311
          %v1313 = vpop.f32.mrb[0].mxu0
          %1314 = vmatprep.mubr.f32.mxu0 0.0
          %1315 = vmatmul.mubr.f32.gmra.mrb[0].mxu0 %v1243
          %v1316 = vpop.f32.mrb[0].mxu0
          %v1317 = vadd.f32 0.0, %v1316
          %v1318 = vpop.f32.mrb[0].mxu0
          %1319 = vdwg.mxu0
          %v1320 = vadd.f32 %v1144, %v1312
          %v1321 = vadd.f32 %v1145, %v1317
          %v1322 = vld [vmem:[#allocation4 + $0x6] sm:$0xff]
          %v1323 = vld [vmem:[#allocation4 + $0xe] sm:$0xff]
          %v1324 = vld [vmem:[%s272 + $0x6] sm:$0xff]
          %v1325 = vld [vmem:[%s272 + $0xe] sm:$0xff]
          %s1326 = scalar_lea.vmem [#allocation8], 96
          %v1327 = vld [vmem:[%s1326] sm:$0xff]
          %v1328 = vld [vmem:[%s1326 + $0x8] sm:$0xff]
          %v1330 = vsel %vm203, %v1322, 0
          %v1333 = vsel %vm203, %v1323, 0
          %1335 = vmatprep.subr.mxu0 0.0
          %1336 = vmatpush1.msra.mxu0 %v1327
          %1337 = vmatprep.subr.mxu0 0.0
          %1338 = vmatpush1.msra.mxu0 %v1328
          %1339 = vmatprep.subr.mxu0 0.0
          %1340 = vmatpush1.msra.mxu0 0.0
          %1341 = vmatprep.subr.mxu0 0.0
          %1342 = vmatpush1.msra.mxu0 0.0
          %1343 = vmatprep.subr.mxu0 0.0
          %1344 = vmatpush1.msra.mxu0 0.0
          %1345 = vmatprep.subr.mxu0 0.0
          %1346 = vmatpush1.msra.mxu0 0.0
          %1347 = vmatprep.subr.mxu0 0.0
          %1348 = vmatpush1.msra.mxu0 0.0
          %1349 = vmatprep.subr.mxu0 0.0
          %1350 = vmatpush1.msra.mxu0 0.0
          %1351 = vmatprep.subr.mxu0 0.0
          %1352 = vmatpush1.msra.mxu0 0.0
          %1353 = vmatprep.subr.mxu0 0.0
          %1354 = vmatpush1.msra.mxu0 0.0
          %1355 = vmatprep.subr.mxu0 0.0
          %1356 = vmatpush1.msra.mxu0 0.0
          %1357 = vmatprep.subr.mxu0 0.0
          %1358 = vmatpush1.msra.mxu0 0.0
          %1359 = vmatprep.subr.mxu0 0.0
          %1360 = vmatpush1.msra.mxu0 0.0
          %1361 = vmatprep.subr.mxu0 0.0
          %1362 = vmatpush1.msra.mxu0 0.0
          %1363 = vmatprep.subr.mxu0 0.0
          %1364 = vmatpush1.msra.mxu0 0.0
          %1365 = vmatprep.subr.mxu0 0.0
          %1366 = vmatpush1.msra.mxu0 0.0
          %1367 = vmatprep.subr.mxu0 0.0
          %1368 = vmatpush1.msra.mxu0 0.0
          %1369 = vmatprep.subr.mxu0 0.0
          %1370 = vmatpush1.msra.mxu0 0.0
          %1371 = vmatprep.subr.mxu0 0.0
          %1372 = vmatpush1.msra.mxu0 0.0
          %1373 = vmatprep.subr.mxu0 0.0
          %1374 = vmatpush1.msra.mxu0 0.0
          %1375 = vmatprep.subr.mxu0 0.0
          %1376 = vmatpush1.msra.mxu0 0.0
          %1377 = vmatprep.subr.mxu0 0.0
          %1378 = vmatpush1.msra.mxu0 0.0
          %1379 = vmatprep.subr.mxu0 0.0
          %1380 = vmatpush1.msra.mxu0 0.0
          %1381 = vmatprep.subr.mxu0 0.0
          %1382 = vmatpush1.msra.mxu0 0.0
          %1383 = vmatprep.subr.mxu0 0.0
          %1384 = vmatpush1.msra.mxu0 0.0
          %1385 = vmatprep.subr.mxu0 0.0
          %1386 = vmatpush1.msra.mxu0 0.0
          %1387 = vmatprep.subr.mxu0 0.0
          %1388 = vmatpush1.msra.mxu0 0.0
          %1389 = vmatprep.subr.mxu0 0.0
          %1390 = vmatpush1.msra.mxu0 0.0
          %1391 = vmatprep.subr.mxu0 0.0
          %1392 = vmatpush1.msra.mxu0 0.0
          %1393 = vmatprep.subr.mxu0 0.0
          %1394 = vmatpush1.msra.mxu0 0.0
          %1395 = vmatprep.subr.mxu0 0.0
          %1396 = vmatpush1.msra.mxu0 0.0
          %1397 = vmatprep.subr.mxu0 0.0
          %1398 = vmatpush1.msra.mxu0 0.0
          %1399 = vmatprep.mubr.f32.mxu0 0.0
          %1400 = vmatmul.mubr.f32.gmra.mrb[0].mxu0 %v1330
          %v1401 = vpop.f32.mrb[0].mxu0
          %v1402 = vadd.f32 0.0, %v1401
          %v1403 = vpop.f32.mrb[0].mxu0
          %1404 = vmatprep.mubr.f32.mxu0 0.0
          %1405 = vmatmul.mubr.f32.gmra.mrb[0].mxu0 %v1333
          %v1406 = vpop.f32.mrb[0].mxu0
          %v1407 = vadd.f32 0.0, %v1406
          %v1408 = vpop.f32.mrb[0].mxu0
          %1409 = vdwg.mxu0
          %v1410 = vadd.f32 %v1234, %v1402
          %v1411 = vadd.f32 %v1235, %v1407
          %s1412 = scalar_lea.vmem [#allocation8], 208
          %v1413 = vld [vmem:[%s1412] sm:$0xff]
          %v1414 = vld [vmem:[%s1412 + $0x8] sm:$0xff]
          %v1416 = vsel %vm203, %v1324, 0
          %v1419 = vsel %vm203, %v1325, 0
          %1421 = vmatprep.subr.mxu0 0.0
          %1422 = vmatpush1.msra.mxu0 %v1413
          %1423 = vmatprep.subr.mxu0 0.0
          %1424 = vmatpush1.msra.mxu0 %v1414
          %1425 = vmatprep.subr.mxu0 0.0
          %1426 = vmatpush1.msra.mxu0 0.0
          %1427 = vmatprep.subr.mxu0 0.0
          %1428 = vmatpush1.msra.mxu0 0.0
          %1429 = vmatprep.subr.mxu0 0.0
          %1430 = vmatpush1.msra.mxu0 0.0
          %1431 = vmatprep.subr.mxu0 0.0
          %1432 = vmatpush1.msra.mxu0 0.0
          %1433 = vmatprep.subr.mxu0 0.0
          %1434 = vmatpush1.msra.mxu0 0.0
          %1435 = vmatprep.subr.mxu0 0.0
          %1436 = vmatpush1.msra.mxu0 0.0
          %1437 = vmatprep.subr.mxu0 0.0
          %1438 = vmatpush1.msra.mxu0 0.0
          %1439 = vmatprep.subr.mxu0 0.0
          %1440 = vmatpush1.msra.mxu0 0.0
          %1441 = vmatprep.subr.mxu0 0.0
          %1442 = vmatpush1.msra.mxu0 0.0
          %1443 = vmatprep.subr.mxu0 0.0
          %1444 = vmatpush1.msra.mxu0 0.0
          %1445 = vmatprep.subr.mxu0 0.0
          %1446 = vmatpush1.msra.mxu0 0.0
          %1447 = vmatprep.subr.mxu0 0.0
          %1448 = vmatpush1.msra.mxu0 0.0
          %1449 = vmatprep.subr.mxu0 0.0
          %1450 = vmatpush1.msra.mxu0 0.0
          %1451 = vmatprep.subr.mxu0 0.0
          %1452 = vmatpush1.msra.mxu0 0.0
          %1453 = vmatprep.subr.mxu0 0.0
          %1454 = vmatpush1.msra.mxu0 0.0
          %1455 = vmatprep.subr.mxu0 0.0
          %1456 = vmatpush1.msra.mxu0 0.0
          %1457 = vmatprep.subr.mxu0 0.0
          %1458 = vmatpush1.msra.mxu0 0.0
          %1459 = vmatprep.subr.mxu0 0.0
          %1460 = vmatpush1.msra.mxu0 0.0
          %1461 = vmatprep.subr.mxu0 0.0
          %1462 = vmatpush1.msra.mxu0 0.0
          %1463 = vmatprep.subr.mxu0 0.0
          %1464 = vmatpush1.msra.mxu0 0.0
          %1465 = vmatprep.subr.mxu0 0.0
          %1466 = vmatpush1.msra.mxu0 0.0
          %1467 = vmatprep.subr.mxu0 0.0
          %1468 = vmatpush1.msra.mxu0 0.0
          %1469 = vmatprep.subr.mxu0 0.0
          %1470 = vmatpush1.msra.mxu0 0.0
          %1471 = vmatprep.subr.mxu0 0.0
          %1472 = vmatpush1.msra.mxu0 0.0
          %1473 = vmatprep.subr.mxu0 0.0
          %1474 = vmatpush1.msra.mxu0 0.0
          %1475 = vmatprep.subr.mxu0 0.0
          %1476 = vmatpush1.msra.mxu0 0.0
          %1477 = vmatprep.subr.mxu0 0.0
          %1478 = vmatpush1.msra.mxu0 0.0
          %1479 = vmatprep.subr.mxu0 0.0
          %1480 = vmatpush1.msra.mxu0 0.0
          %1481 = vmatprep.subr.mxu0 0.0
          %1482 = vmatpush1.msra.mxu0 0.0
          %1483 = vmatprep.subr.mxu0 0.0
          %1484 = vmatpush1.msra.mxu0 0.0
          %1485 = vmatprep.mubr.f32.mxu0 0.0
          %1486 = vmatmul.mubr.f32.gmra.mrb[0].mxu0 %v1416
          %v1487 = vpop.f32.mrb[0].mxu0
          %v1488 = vadd.f32 0.0, %v1487
          %v1489 = vpop.f32.mrb[0].mxu0
          %1490 = vmatprep.mubr.f32.mxu0 0.0
          %1491 = vmatmul.mubr.f32.gmra.mrb[0].mxu0 %v1419
          %v1492 = vpop.f32.mrb[0].mxu0
          %v1493 = vadd.f32 0.0, %v1492
          %v1494 = vpop.f32.mrb[0].mxu0
          %1495 = vdwg.mxu0
          %v1496 = vadd.f32 %v1320, %v1488
          %v1497 = vadd.f32 %v1321, %v1493
          %v1498 = vadd.f32 %v1410, %v1496
          %v1499 = vadd.f32 %v1411, %v1497
          %v1500 = vxor.u32 %v1498, 2147483648
          %v1501 = vxor.u32 %v1499, 2147483648
          %v1502 = vmul.f32 %v1500, 1.442695
          %v1503 = vpow.pop %v1502
          %v1504 = vmul.f32 %v1501, 1.442695
          %v1505 = vpow.pop %v1504
          %v1506 = vadd.f32 %v1503, 1.0
          %v1507 = vadd.f32 %v1505, 1.0
          %v1508 = vrcp.pop %v1506
          %v1509 = vmul.f32 1.0, %v1508
          %v1510 = vrcp.pop %v1507
          %v1511 = vmul.f32 1.0, %v1510
          %1512 = vst.msk [vmem:[%s193] sm:$0xff] %vm203, %v1509
          %1513 = vst.msk [vmem:[%s193 + $0x8] sm:$0xff] %vm203, %v1511
        $region48: #{tpu_custom_call.1} parent=27 // pred_fallthru
          _
        %s1514 = sand.u32 %s89, 1
        %s1515 = scalar_lea.sflag [#allocation7], %s1514
        %s1516 = sand.u32 %s89, 1
        %s1517 = smul.addr %s1516, 16
        %s1518 = scalar_lea.vmem [#allocation10], %s1517
        // Predicated region
        $region49: #{tpu_custom_call.1} parent=27 // pred_check
          %p1519 = pneg %p99
        $region50: #{tpu_custom_call.1} parent=27 // pred_check_branch
          %1521 = sbr.rel (%p1519) target = $region52
        $region51: #{tpu_custom_call.1} parent=27 // pred_region
          %s1523 = ssub.s32 256, 256
          %1524 = vsyncadd %s1515, %s1523
          %s1525 = smul.addr %s24, 2
          %s1526 = smul.addr %s1525, 128
          %s1527 = scalar_lea.hbm %s2, %s1526
          %s1528 = sshll.u32 %s1518, 4
          %s1529 = int_to_ptr.vmem [resolvable:$true] %s1528
          %1534 = dma.vmem_to_hbm [thread:$0]  %s1529, 256, %s1527, %s1515, 128, 128, 8
        $region52: #{tpu_custom_call.1} parent=27 // pred_fallthru
          _
      $region28: #{tpu_custom_call.1} parent=5 // pred_fallthru
        _
      %p1535 = scmp.le.s32.totalorder 2, %s15
      // Predicated region
      $region53: #{tpu_custom_call.1} parent=5 // pred_check
        %p1536 = pneg %p1535
      $region54: #{tpu_custom_call.1} parent=5 // pred_check_branch
        %1538 = sbr.rel (%p1536) target = $region56
      $region55: #{tpu_custom_call.1} parent=5 // pred_region
        %s1539 = ssub.s32 %s15, 2
        // Predicated region
        $region57: #{tpu_custom_call.1} parent=55 // pred_check
          %p1540 = pneg %p105
        $region58: #{tpu_custom_call.1} parent=55 // pred_check_branch
          %1542 = sbr.rel (%p1540) target = $region60
        $region59: #{tpu_custom_call.1} parent=55 // pred_region
          %s1543 = sand.u32 %s90, 1
          %s1544 = scalar_lea.sflag [#allocation7], %s1543
          %s1545 = sand.u32 %s90, 1
          %s1546 = smul.addr %s1545, 16
          %s1547 = scalar_lea.vmem [#allocation10], %s1546
          %1548 = dma.done %s1544, 256
        $region60: #{tpu_custom_call.1} parent=55 // pred_fallthru
          _
      $region56: #{tpu_custom_call.1} parent=5 // pred_fallthru
        _
    $region6: #{tpu_custom_call.1} parent=1 // loop_footer
      %s19 = sadd.s32 1, %s15
    $region7: #{tpu_custom_call.1} parent=1 // loop_footer_branch
      %14 = sbr.rel target = $region3
    $region8: #{tpu_custom_call.1} parent=1 // loop_exit
      _
    %1549 = vsyncpa [#allocation6], 1
    %s1550 = scalar_lea.sflag [#allocation6], 1
    %1551 = vsyncpa %s1550, 1
    %1552 = vsyncpa [#allocation9], 1
    %1553 = vsyncpa [#allocation7], 1
    %s1554 = scalar_lea.sflag [#allocation7], 1
    %1555 = vsyncpa %s1554, 1

</llo_original>
